<compile_context>
chip_gen: v7x
topology: tpu7x:2x2x1
jax: 0.10.0
libtpu: 0.0.40
codegen_flags: <defaults>
</compile_context>

<pallas_src>
import functools

import jax
import jax.numpy as jnp
from jax.experimental import pallas as pl
from jax.experimental.pallas import tpu as pltpu


# ----------------------------------------------------------------------------
# Embedding: nn.Embedding lookup as a one-hot MXU matmul (tiny vocab).
# ----------------------------------------------------------------------------
def _embedding_kernel(ids_ref, table_ref, out_ref):
    n = out_ref.shape[0]
    v = table_ref.shape[0]
    ids = ids_ref[...]                                           # (n, 1) int32
    onehot = (jax.lax.broadcasted_iota(jnp.int32, (n, v), 1) == ids)
    out_ref[...] = jnp.dot(onehot.astype(jnp.float32), table_ref[...],
                           preferred_element_type=jnp.float32)


def embedding_forward(tokens, emb_table):
    """tokens: (T, B) int32 -> (T, B, ninp) f32."""
    T, B = tokens.shape
    V, E = emb_table.shape
    ids = tokens.reshape(T * B, 1).astype(jnp.int32)
    out = pl.pallas_call(
        _embedding_kernel,
        out_shape=jax.ShapeDtypeStruct((T * B, E), jnp.float32),
        grid=(),
        in_specs=[pl.BlockSpec((T * B, 1), lambda: (0, 0)),
                  pl.BlockSpec((V, E), lambda: (0, 0))],
        out_specs=pl.BlockSpec((T * B, E), lambda: (0, 0)),
    )(ids, emb_table)
    return out.reshape(T, B, E)


# ----------------------------------------------------------------------------
# One LSTM layer over the full (length-masked) sequence + fused time pooling.
# ----------------------------------------------------------------------------
def _lstm_pool_kernel(x_ref, m_ref, wih_ref, whh_ref, b_ref,
                      y_ref, ht_ref, pool_ref,
                      h_sc, c_sc, sum_sc, max_sc, *, inv_seq_len):
    t = pl.program_id(0)
    H = h_sc.shape[-1]

    @pl.when(t == 0)
    def _():
        h_sc[...] = jnp.zeros_like(h_sc)
        c_sc[...] = jnp.zeros_like(c_sc)
        sum_sc[...] = jnp.zeros_like(sum_sc)
        max_sc[...] = jnp.full_like(max_sc, -jnp.inf)

    x_t = x_ref[0]                                   # (B, Din) f32
    m_t = m_ref[0]                                   # (B, 1)   f32 length mask
    h = h_sc[...]
    c = c_sc[...]

    # Fused gate matmul: x @ W_ih + h @ W_hh + (b_ih + b_hh folded on host).
    gates = (jnp.dot(x_t, wih_ref[...], preferred_element_type=jnp.float32)
             + jnp.dot(h, whh_ref[...], preferred_element_type=jnp.float32)
             + b_ref[...])                           # (B, 4H)

    i_g = jax.nn.sigmoid(gates[:, 0 * H:1 * H])
    f_g = jax.nn.sigmoid(gates[:, 1 * H:2 * H])
    g_g = jnp.tanh(gates[:, 2 * H:3 * H])
    o_g = jax.nn.sigmoid(gates[:, 3 * H:4 * H])

    c_new = f_g * c + i_g * g_g
    h_new = o_g * jnp.tanh(c_new)

    # pack_padded_sequence semantics: freeze (h, c) past each sequence length,
    # emit zeros at padded positions (matches pad_packed_sequence output).
    c_sc[...] = m_t * c_new + (1.0 - m_t) * c
    h_sc[...] = m_t * h_new + (1.0 - m_t) * h
    y_t = m_t * h_new

    y_ref[0] = y_t.astype(y_ref.dtype)

    # Fused pooling accumulators (mean / max over the zero-padded output).
    sum_sc[...] += y_t
    max_sc[...] = jnp.maximum(max_sc[...], y_t)

    @pl.when(t == pl.num_programs(0) - 1)
    def _():
        ht_ref[...] = h_sc[...].astype(ht_ref.dtype)
        pool_ref[:, 0 * H:1 * H] = h_sc[...].astype(pool_ref.dtype)
        pool_ref[:, 1 * H:2 * H] = (sum_sc[...] * inv_seq_len).astype(pool_ref.dtype)
        pool_ref[:, 2 * H:3 * H] = max_sc[...].astype(pool_ref.dtype)


def lstm_layer_forward(x, mask, wih, whh, b):
    """x: (T, B, Din), mask: (T, B, 1). Returns (y:(T,B,H), ht:(B,H), pooled:(B,3H))."""
    T, B, Din = x.shape
    H = whh.shape[0]
    kernel = functools.partial(_lstm_pool_kernel, inv_seq_len=1.0 / T)

    grid_spec = pltpu.PrefetchScalarGridSpec(
        num_scalar_prefetch=0,
        grid=(T,),
        in_specs=[
            pl.BlockSpec((1, B, Din), lambda t: (t, 0, 0)),   # streamed per step
            pl.BlockSpec((1, B, 1), lambda t: (t, 0, 0)),     # streamed per step
            pl.BlockSpec((Din, 4 * H), lambda t: (0, 0)),     # VMEM-resident
            pl.BlockSpec((H, 4 * H), lambda t: (0, 0)),       # VMEM-resident
            pl.BlockSpec((1, 4 * H), lambda t: (0, 0)),       # VMEM-resident
        ],
        out_specs=[
            pl.BlockSpec((1, B, H), lambda t: (t, 0, 0)),
            pl.BlockSpec((B, H), lambda t: (0, 0)),
            pl.BlockSpec((B, 3 * H), lambda t: (0, 0)),
        ],
        scratch_shapes=[pltpu.VMEM((B, H), jnp.float32)] * 4,  # h, c, sum, max
    )

    return pl.pallas_call(
        kernel,
        out_shape=(
            jax.ShapeDtypeStruct((T, B, H), jnp.float32),
            jax.ShapeDtypeStruct((B, H), jnp.float32),
            jax.ShapeDtypeStruct((B, 3 * H), jnp.float32),
        ),
        grid_spec=grid_spec,
        # Time recurrence -> sequential ("arbitrary") grid axis.
        compiler_params=pltpu.CompilerParams(dimension_semantics=("arbitrary",)),
    )(x, mask, wih, whh, b)


# ----------------------------------------------------------------------------
# Full model forward (eval mode, pooling=False branch of the PyTorch module).
# ----------------------------------------------------------------------------
@jax.jit
def lm_forward(tokens, seq_length, params):
    T, B = tokens.shape
    mask = (jnp.arange(T, dtype=jnp.int32)[:, None]
            < seq_length[None, :]).astype(jnp.float32)[:, :, None]   # (T, B, 1)

    x = embedding_forward(tokens, params["emb"])
    hts = []
    pooled = None
    for layer in params["layers"]:
        y, ht, pooled = lstm_layer_forward(x, mask, layer["wih"], layer["whh"],
                                           layer["b"])
        hts.append(ht)
        x = y
    # pooled == concat([last_hidden, mean_t(last_layer_out), max_t(last_layer_out)])
    return pooled, hts


# ----------------------------------------------------------------------------
# Parameter init (PyTorch-like) and pure-JAX reference.
# ----------------------------------------------------------------------------
def init_params(key, ntoken, ninp, nhid, nlayers):
    keys = jax.random.split(key, 1 + 4 * nlayers)
    emb = jax.random.normal(keys[0], (ntoken, ninp), jnp.float32) * 0.1
    layers = []
    for l in range(nlayers):
        din = ninp if l == 0 else nhid
        bound = 1.0 / (nhid ** 0.5)
        kw1, kw2, kb1, kb2 = keys[1 + 4 * l: 5 + 4 * l]
        wih = jax.random.uniform(kw1, (din, 4 * nhid), jnp.float32, -bound, bound)
        whh = jax.random.uniform(kw2, (nhid, 4 * nhid), jnp.float32, -bound, bound)
        b_ih = jax.random.uniform(kb1, (4 * nhid,), jnp.float32, -bound, bound)
        b_hh = jax.random.uniform(kb2, (4 * nhid,), jnp.float32, -bound, bound)
        layers.append(dict(wih=wih, whh=whh, b=(b_ih + b_hh).reshape(1, 4 * nhid)))
    return dict(emb=emb, layers=layers)


def reference_forward(tokens, seq_length, params):
    T, B = tokens.shape
    mask = (jnp.arange(T)[:, None] < seq_length[None, :]).astype(jnp.float32)[:, :, None]
    x = params["emb"][tokens]                        # (T, B, ninp)
    hts = []
    y = None
    for layer in params["layers"]:
        wih, whh, b = layer["wih"], layer["whh"], layer["b"]
        H = whh.shape[0]
        h = jnp.zeros((B, H), jnp.float32)
        c = jnp.zeros((B, H), jnp.float32)
        ys = []
        for t in range(T):
            gates = x[t] @ wih + h @ whh + b
            i_g = jax.nn.sigmoid(gates[:, 0 * H:1 * H])
            f_g = jax.nn.sigmoid(gates[:, 1 * H:2 * H])
            g_g = jnp.tanh(gates[:, 2 * H:3 * H])
            o_g = jax.nn.sigmoid(gates[:, 3 * H:4 * H])
            c_new = f_g * c + i_g * g_g
            h_new = o_g * jnp.tanh(c_new)
            m = mask[t]
            c = m * c_new + (1.0 - m) * c
            h = m * h_new + (1.0 - m) * h
            ys.append(m * h_new)
        y = jnp.stack(ys, axis=0)
        hts.append(h)
        x = y
    avg = jnp.mean(y, axis=0)
    mx = jnp.max(y, axis=0)
    concat = jnp.concatenate([hts[-1], avg, mx], axis=1)
    return concat, hts


if __name__ == "__main__":
    T, B, NTOKEN, NINP, NHID, NLAYERS = 8, 8, 32, 64, 64, 2

    key = jax.random.PRNGKey(0)
    k_tok, k_param = jax.random.split(key)
    tokens = jax.random.randint(k_tok, (T, B), 0, NTOKEN, dtype=jnp.int32)
    # pack_padded_sequence expects descending lengths.
    seq_length = jnp.array([8, 8, 7, 6, 5, 4, 3, 2], dtype=jnp.int32)
    params = init_params(k_param, NTOKEN, NINP, NHID, NLAYERS)

    concat, hts = lm_forward(tokens, seq_length, params)
    concat = jax.block_until_ready(concat)

    ref_concat, ref_hts = reference_forward(tokens, seq_length, params)

    assert concat.shape == (B, 3 * NHID)
    assert len(hts) == NLAYERS and all(h.shape == (B, NHID) for h in hts)
    # Tolerance covers MXU vs XLA f32 matmul pass differences.
    assert jnp.allclose(concat, ref_concat, atol=5e-3, rtol=5e-3)
    for h, rh in zip(hts, ref_hts):
        assert jnp.allclose(h, rh, atol=5e-3, rtol=5e-3)

    print("KERNEL_OK")
</pallas_src>

<mosaic_0001>
module attributes {stable_mosaic.version = 11 : i64} {
  func.func @_embedding_kernel(%arg0: memref<64x1xi32, #tpu.memory_space<vmem>>, %arg1: memref<32x64xf32, #tpu.memory_space<vmem>>, %arg2: memref<64x64xf32, #tpu.memory_space<vmem>>) attributes {dimension_semantics = [], scalar_prefetch = 0 : i64, scratch_operands = 0 : i64, tpu.core_type = #tpu.core_type<tc>} {
    %c0 = arith.constant 0 : index
    %c0_0 = arith.constant 0 : index
    %0 = vector.load %arg0[%c0, %c0_0] : memref<64x1xi32, #tpu.memory_space<vmem>>, vector<64x1xi32>
    %1 = tpu.iota {dimensions = array<i32: 1>} : vector<64x32xi32>
    %2 = vector.broadcast %0 : vector<64x1xi32> to vector<64x32xi32>
    %3 = arith.cmpi eq, %1, %2 : vector<64x32xi32>
    %4 = arith.extui %3 : vector<64x32xi1> to vector<64x32xi32>
    %5 = arith.sitofp %4 : vector<64x32xi32> to vector<64x32xf32>
    %c0_1 = arith.constant 0 : index
    %c0_2 = arith.constant 0 : index
    %6 = vector.load %arg1[%c0_1, %c0_2] : memref<32x64xf32, #tpu.memory_space<vmem>>, vector<32x64xf32>
    %cst = arith.constant dense<0.000000e+00> : vector<64x64xf32>
    %7 = tpu.matmul %5, %6, %cst {dimension_numbers = #tpu.dot_dimension_numbers<[1], [0], [0], [1], [0, 0, 1, 1], [], []>} : vector<64x32xf32>, vector<32x64xf32>, vector<64x64xf32> -> vector<64x64xf32>
    %c0_3 = arith.constant 0 : index
    %c0_4 = arith.constant 0 : index
    %8 = vector.load %arg2[%c0_3, %c0_4] : memref<64x64xf32, #tpu.memory_space<vmem>>, vector<64x64xf32>
    tpu.vector_store %arg2[%c0_3, %c0_4], %7 {strides = array<i32>} : memref<64x64xf32, #tpu.memory_space<vmem>>, vector<64x64xf32>,
    return
  }
}

module attributes {stable_mosaic.version = 11 : i64} {
  func.func @_lstm_pool_kernel(%arg0: i32, %arg1: memref<1x8x64xf32, #tpu.memory_space<vmem>>, %arg2: memref<1x8x1xf32, #tpu.memory_space<vmem>>, %arg3: memref<64x256xf32, #tpu.memory_space<vmem>>, %arg4: memref<64x256xf32, #tpu.memory_space<vmem>>, %arg5: memref<1x256xf32, #tpu.memory_space<vmem>>, %arg6: memref<1x8x64xf32, #tpu.memory_space<vmem>>, %arg7: memref<8x64xf32, #tpu.memory_space<vmem>>, %arg8: memref<8x192xf32, #tpu.memory_space<vmem>>, %arg9: memref<8x64xf32, #tpu.memory_space<vmem>>, %arg10: memref<8x64xf32, #tpu.memory_space<vmem>>, %arg11: memref<8x64xf32, #tpu.memory_space<vmem>>, %arg12: memref<8x64xf32, #tpu.memory_space<vmem>>) attributes {dimension_semantics = [#tpu.dimension_semantics<arbitrary>], iteration_bounds = array<i64: 8>, scalar_prefetch = 0 : i64, scratch_operands = 4 : i64, tpu.core_type = #tpu.core_type<tc>, window_params = [{transform_indices = @transform_0, window_bounds = array<i64: 1, 8, 64>}, {transform_indices = @transform_1, window_bounds = array<i64: 1, 8, 1>}, {pipeline_mode = #tpu.pipeline_mode<synchronous>, transform_indices = @transform_2, window_bounds = array<i64: 64, 256>}, {pipeline_mode = #tpu.pipeline_mode<synchronous>, transform_indices = @transform_3, window_bounds = array<i64: 64, 256>}, {pipeline_mode = #tpu.pipeline_mode<synchronous>, transform_indices = @transform_4, window_bounds = array<i64: 1, 256>}, {transform_indices = @transform_5, window_bounds = array<i64: 1, 8, 64>}, {pipeline_mode = #tpu.pipeline_mode<synchronous>, transform_indices = @transform_6, window_bounds = array<i64: 8, 64>}, {pipeline_mode = #tpu.pipeline_mode<synchronous>, transform_indices = @transform_7, window_bounds = array<i64: 8, 192>}]} {
    %c0_i32 = arith.constant 0 : i32
    %0 = arith.cmpi eq, %arg0, %c0_i32 : i32
    %1 = arith.extui %0 : i1 to i32
    %c0_i32_0 = arith.constant 0 : i32
    %2 = arith.cmpi ne, %1, %c0_i32_0 : i32
    scf.if %2 {
      %cst_38 = arith.constant 0.000000e+00 : f32
      %72 = vector.broadcast %cst_38 : f32 to vector<8x64xf32>
      %c0_39 = arith.constant 0 : index
      %c0_40 = arith.constant 0 : index
      %73 = vector.load %arg9[%c0_39, %c0_40] : memref<8x64xf32, #tpu.memory_space<vmem>>, vector<8x64xf32>
      tpu.vector_store %arg9[%c0_39, %c0_40], %72 {strides = array<i32>} : memref<8x64xf32, #tpu.memory_space<vmem>>, vector<8x64xf32>,
      %cst_41 = arith.constant 0.000000e+00 : f32
      %74 = vector.broadcast %cst_41 : f32 to vector<8x64xf32>
      %c0_42 = arith.constant 0 : index
      %c0_43 = arith.constant 0 : index
      %75 = vector.load %arg10[%c0_42, %c0_43] : memref<8x64xf32, #tpu.memory_space<vmem>>, vector<8x64xf32>
      tpu.vector_store %arg10[%c0_42, %c0_43], %74 {strides = array<i32>} : memref<8x64xf32, #tpu.memory_space<vmem>>, vector<8x64xf32>,
      %cst_44 = arith.constant 0.000000e+00 : f32
      %76 = vector.broadcast %cst_44 : f32 to vector<8x64xf32>
      %c0_45 = arith.constant 0 : index
      %c0_46 = arith.constant 0 : index
      %77 = vector.load %arg11[%c0_45, %c0_46] : memref<8x64xf32, #tpu.memory_space<vmem>>, vector<8x64xf32>
      tpu.vector_store %arg11[%c0_45, %c0_46], %76 {strides = array<i32>} : memref<8x64xf32, #tpu.memory_space<vmem>>, vector<8x64xf32>,
      %cst_47 = arith.constant 0xFF800000 : f32
      %78 = vector.broadcast %cst_47 : f32 to vector<8x64xf32>
      %c0_48 = arith.constant 0 : index
      %c0_49 = arith.constant 0 : index
      %79 = vector.load %arg12[%c0_48, %c0_49] : memref<8x64xf32, #tpu.memory_space<vmem>>, vector<8x64xf32>
      tpu.vector_store %arg12[%c0_48, %c0_49], %78 {strides = array<i32>} : memref<8x64xf32, #tpu.memory_space<vmem>>, vector<8x64xf32>,
    } else {
    }
    %c0 = arith.constant 0 : index
    %c0_1 = arith.constant 0 : index
    %c0_2 = arith.constant 0 : index
    %3 = vector.load %arg1[%c0, %c0_1, %c0_2] : memref<1x8x64xf32, #tpu.memory_space<vmem>>, vector<1x8x64xf32>
    %4 = vector.shape_cast %3 : vector<1x8x64xf32> to vector<8x64xf32>
    %c0_3 = arith.constant 0 : index
    %c0_4 = arith.constant 0 : index
    %c0_5 = arith.constant 0 : index
    %5 = vector.load %arg2[%c0_3, %c0_4, %c0_5] : memref<1x8x1xf32, #tpu.memory_space<vmem>>, vector<1x8x1xf32>
    %6 = vector.shape_cast %5 : vector<1x8x1xf32> to vector<8x1xf32>
    %c0_6 = arith.constant 0 : index
    %c0_7 = arith.constant 0 : index
    %7 = vector.load %arg9[%c0_6, %c0_7] : memref<8x64xf32, #tpu.memory_space<vmem>>, vector<8x64xf32>
    %c0_8 = arith.constant 0 : index
    %c0_9 = arith.constant 0 : index
    %8 = vector.load %arg10[%c0_8, %c0_9] : memref<8x64xf32, #tpu.memory_space<vmem>>, vector<8x64xf32>
    %c0_10 = arith.constant 0 : index
    %c0_11 = arith.constant 0 : index
    %9 = vector.load %arg3[%c0_10, %c0_11] : memref<64x256xf32, #tpu.memory_space<vmem>>, vector<64x256xf32>
    %cst = arith.constant dense<0.000000e+00> : vector<8x256xf32>
    %10 = tpu.matmul %4, %9, %cst {dimension_numbers = #tpu.dot_dimension_numbers<[1], [0], [0], [1], [0, 0, 1, 1], [], []>} : vector<8x64xf32>, vector<64x256xf32>, vector<8x256xf32> -> vector<8x256xf32>
    %c0_12 = arith.constant 0 : index
    %c0_13 = arith.constant 0 : index
    %11 = vector.load %arg4[%c0_12, %c0_13] : memref<64x256xf32, #tpu.memory_space<vmem>>, vector<64x256xf32>
    %cst_14 = arith.constant dense<0.000000e+00> : vector<8x256xf32>
    %12 = tpu.matmul %7, %11, %cst_14 {dimension_numbers = #tpu.dot_dimension_numbers<[1], [0], [0], [1], [0, 0, 1, 1], [], []>} : vector<8x64xf32>, vector<64x256xf32>, vector<8x256xf32> -> vector<8x256xf32>
    %13 = arith.addf %10, %12 : vector<8x256xf32>
    %c0_15 = arith.constant 0 : index
    %c0_16 = arith.constant 0 : index
    %14 = vector.load %arg5[%c0_15, %c0_16] : memref<1x256xf32, #tpu.memory_space<vmem>>, vector<1x256xf32>
    %15 = vector.broadcast %14 : vector<1x256xf32> to vector<8x256xf32>
    %16 = arith.addf %13, %15 : vector<8x256xf32>
    %17 = vector.extract_strided_slice %16 {offsets = [0, 0], sizes = [8, 64], strides = [1, 1]} : vector<8x256xf32> to vector<8x64xf32>
    %18 = arith.negf %17 : vector<8x64xf32>
    %19 = math.exp %18 : vector<8x64xf32>
    %cst_17 = arith.constant 1.000000e+00 : f32
    %20 = vector.broadcast %cst_17 : f32 to vector<8x64xf32>
    %21 = arith.addf %20, %19 : vector<8x64xf32>
    %22 = arith.divf %20, %21 : vector<8x64xf32>
    %23 = vector.extract_strided_slice %16 {offsets = [0, 64], sizes = [8, 64], strides = [1, 1]} : vector<8x256xf32> to vector<8x64xf32>
    %24 = arith.negf %23 : vector<8x64xf32>
    %25 = math.exp %24 : vector<8x64xf32>
    %cst_18 = arith.constant 1.000000e+00 : f32
    %26 = vector.broadcast %cst_18 : f32 to vector<8x64xf32>
    %27 = arith.addf %26, %25 : vector<8x64xf32>
    %28 = arith.divf %26, %27 : vector<8x64xf32>
    %29 = vector.extract_strided_slice %16 {offsets = [0, 128], sizes = [8, 64], strides = [1, 1]} : vector<8x256xf32> to vector<8x64xf32>
    %30 = math.tanh %29 : vector<8x64xf32>
    %31 = vector.extract_strided_slice %16 {offsets = [0, 192], sizes = [8, 64], strides = [1, 1]} : vector<8x256xf32> to vector<8x64xf32>
    %32 = arith.negf %31 : vector<8x64xf32>
    %33 = math.exp %32 : vector<8x64xf32>
    %cst_19 = arith.constant 1.000000e+00 : f32
    %34 = vector.broadcast %cst_19 : f32 to vector<8x64xf32>
    %35 = arith.addf %34, %33 : vector<8x64xf32>
    %36 = arith.divf %34, %35 : vector<8x64xf32>
    %37 = arith.mulf %28, %8 : vector<8x64xf32>
    %38 = arith.mulf %22, %30 : vector<8x64xf32>
    %39 = arith.addf %37, %38 : vector<8x64xf32>
    %40 = math.tanh %39 : vector<8x64xf32>
    %41 = arith.mulf %36, %40 : vector<8x64xf32>
    %42 = vector.broadcast %6 : vector<8x1xf32> to vector<8x64xf32>
    %43 = arith.mulf %42, %39 : vector<8x64xf32>
    %cst_20 = arith.constant 1.000000e+00 : f32
    %44 = vector.broadcast %cst_20 : f32 to vector<8x1xf32>
    %45 = arith.subf %44, %6 : vector<8x1xf32>
    %46 = vector.broadcast %45 : vector<8x1xf32> to vector<8x64xf32>
    %47 = arith.mulf %46, %8 : vector<8x64xf32>
    %48 = arith.addf %43, %47 : vector<8x64xf32>
    %c0_21 = arith.constant 0 : index
    %c0_22 = arith.constant 0 : index
    %49 = vector.load %arg10[%c0_21, %c0_22] : memref<8x64xf32, #tpu.memory_space<vmem>>, vector<8x64xf32>
    tpu.vector_store %arg10[%c0_21, %c0_22], %48 {strides = array<i32>} : memref<8x64xf32, #tpu.memory_space<vmem>>, vector<8x64xf32>,
    %50 = vector.broadcast %6 : vector<8x1xf32> to vector<8x64xf32>
    %51 = arith.mulf %50, %41 : vector<8x64xf32>
    %cst_23 = arith.constant 1.000000e+00 : f32
    %52 = vector.broadcast %cst_23 : f32 to vector<8x1xf32>
    %53 = arith.subf %52, %6 : vector<8x1xf32>
    %54 = vector.broadcast %53 : vector<8x1xf32> to vector<8x64xf32>
    %55 = arith.mulf %54, %7 : vector<8x64xf32>
    %56 = arith.addf %51, %55 : vector<8x64xf32>
    %c0_24 = arith.constant 0 : index
    %c0_25 = arith.constant 0 : index
    %57 = vector.load %arg9[%c0_24, %c0_25] : memref<8x64xf32, #tpu.memory_space<vmem>>, vector<8x64xf32>
    tpu.vector_store %arg9[%c0_24, %c0_25], %56 {strides = array<i32>} : memref<8x64xf32, #tpu.memory_space<vmem>>, vector<8x64xf32>,
    %58 = vector.broadcast %6 : vector<8x1xf32> to vector<8x64xf32>
    %59 = arith.mulf %58, %41 : vector<8x64xf32>
    %c0_26 = arith.constant 0 : index
    %c0_27 = arith.constant 0 : index
    %c0_28 = arith.constant 0 : index
    %60 = vector.load %arg6[%c0_26, %c0_27, %c0_28] : memref<1x8x64xf32, #tpu.memory_space<vmem>>, vector<1x8x64xf32>
    %61 = vector.shape_cast %60 : vector<1x8x64xf32> to vector<8x64xf32>
    %62 = vector.shape_cast %59 : vector<8x64xf32> to vector<1x8x64xf32>
    tpu.vector_store %arg6[%c0_26, %c0_27, %c0_28], %62 {strides = array<i32>} : memref<1x8x64xf32, #tpu.memory_space<vmem>>, vector<1x8x64xf32>,
    %c0_29 = arith.constant 0 : index
    %c0_30 = arith.constant 0 : index
    %63 = vector.load %arg11[%c0_29, %c0_30] : memref<8x64xf32, #tpu.memory_space<vmem>>, vector<8x64xf32>
    %64 = arith.addf %63, %59 : vector<8x64xf32>
    %c0_31 = arith.constant 0 : index
    %c0_32 = arith.constant 0 : index
    %65 = vector.load %arg11[%c0_31, %c0_32] : memref<8x64xf32, #tpu.memory_space<vmem>>, vector<8x64xf32>
    tpu.vector_store %arg11[%c0_31, %c0_32], %64 {strides = array<i32>} : memref<8x64xf32, #tpu.memory_space<vmem>>, vector<8x64xf32>,
    %c0_33 = arith.constant 0 : index
    %c0_34 = arith.constant 0 : index
    %66 = vector.load %arg12[%c0_33, %c0_34] : memref<8x64xf32, #tpu.memory_space<vmem>>, vector<8x64xf32>
    %67 = arith.maximumf %66, %59 : vector<8x64xf32>
    %c0_35 = arith.constant 0 : index
    %c0_36 = arith.constant 0 : index
    %68 = vector.load %arg12[%c0_35, %c0_36] : memref<8x64xf32, #tpu.memory_space<vmem>>, vector<8x64xf32>
    tpu.vector_store %arg12[%c0_35, %c0_36], %67 {strides = array<i32>} : memref<8x64xf32, #tpu.memory_space<vmem>>, vector<8x64xf32>,
    %c7_i32 = arith.constant 7 : i32
    %69 = arith.cmpi eq, %arg0, %c7_i32 : i32
    %70 = arith.extui %69 : i1 to i32
    %c0_i32_37 = arith.constant 0 : i32
    %71 = arith.cmpi ne, %70, %c0_i32_37 : i32
    scf.if %71 {
      %c0_38 = arith.constant 0 : index
      %c0_39 = arith.constant 0 : index
      %72 = vector.load %arg9[%c0_38, %c0_39] : memref<8x64xf32, #tpu.memory_space<vmem>>, vector<8x64xf32>
      %c0_40 = arith.constant 0 : index
      %c0_41 = arith.constant 0 : index
      %73 = vector.load %arg7[%c0_40, %c0_41] : memref<8x64xf32, #tpu.memory_space<vmem>>, vector<8x64xf32>
      tpu.vector_store %arg7[%c0_40, %c0_41], %72 {strides = array<i32>} : memref<8x64xf32, #tpu.memory_space<vmem>>, vector<8x64xf32>,
      %c0_42 = arith.constant 0 : index
      %c0_43 = arith.constant 0 : index
      %74 = vector.load %arg9[%c0_42, %c0_43] : memref<8x64xf32, #tpu.memory_space<vmem>>, vector<8x64xf32>
      %c0_44 = arith.constant 0 : index
      %c0_45 = arith.constant 0 : index
      %75 = vector.load %arg8[%c0_44, %c0_45] : memref<8x192xf32, #tpu.memory_space<vmem>>, vector<8x64xf32>
      tpu.vector_store %arg8[%c0_44, %c0_45], %74 {strides = array<i32>} : memref<8x192xf32, #tpu.memory_space<vmem>>, vector<8x64xf32>,
      %c0_46 = arith.constant 0 : index
      %c0_47 = arith.constant 0 : index
      %76 = vector.load %arg11[%c0_46, %c0_47] : memref<8x64xf32, #tpu.memory_space<vmem>>, vector<8x64xf32>
      %cst_48 = arith.constant 1.250000e-01 : f32
      %77 = vector.broadcast %cst_48 : f32 to vector<8x64xf32>
      %78 = arith.mulf %76, %77 : vector<8x64xf32>
      %c0_49 = arith.constant 0 : index
      %c64 = arith.constant 64 : index
      %79 = vector.load %arg8[%c0_49, %c64] : memref<8x192xf32, #tpu.memory_space<vmem>>, vector<8x64xf32>
      tpu.vector_store %arg8[%c0_49, %c64], %78 {strides = array<i32>} : memref<8x192xf32, #tpu.memory_space<vmem>>, vector<8x64xf32>,
      %c0_50 = arith.constant 0 : index
      %c0_51 = arith.constant 0 : index
      %80 = vector.load %arg12[%c0_50, %c0_51] : memref<8x64xf32, #tpu.memory_space<vmem>>, vector<8x64xf32>
      %c0_52 = arith.constant 0 : index
      %c128 = arith.constant 128 : index
      %81 = vector.load %arg8[%c0_52, %c128] : memref<8x192xf32, #tpu.memory_space<vmem>>, vector<8x64xf32>
      tpu.vector_store %arg8[%c0_52, %c128], %80 {strides = array<i32>} : memref<8x192xf32, #tpu.memory_space<vmem>>, vector<8x64xf32>,
    } else {
    }
    return
  }
  func.func @transform_0(%arg0: i32) -> (i32, i32, i32) {
    %c0_i32 = arith.constant 0 : i32
    %c0_i32_0 = arith.constant 0 : i32
    %c0_i32_1 = arith.constant 0 : i32
    return %arg0, %c0_i32, %c0_i32_0 : i32, i32, i32
  }
  func.func @transform_1(%arg0: i32) -> (i32, i32, i32) {
    %c0_i32 = arith.constant 0 : i32
    %c0_i32_0 = arith.constant 0 : i32
    %c0_i32_1 = arith.constant 0 : i32
    return %arg0, %c0_i32, %c0_i32_0 : i32, i32, i32
  }
  func.func @transform_2(%arg0: i32) -> (i32, i32) {
    %c0_i32 = arith.constant 0 : i32
    %c0_i32_0 = arith.constant 0 : i32
    %c0_i32_1 = arith.constant 0 : i32
    return %c0_i32, %c0_i32_0 : i32, i32
  }
  func.func @transform_3(%arg0: i32) -> (i32, i32) {
    %c0_i32 = arith.constant 0 : i32
    %c0_i32_0 = arith.constant 0 : i32
    %c0_i32_1 = arith.constant 0 : i32
    return %c0_i32, %c0_i32_0 : i32, i32
  }
  func.func @transform_4(%arg0: i32) -> (i32, i32) {
    %c0_i32 = arith.constant 0 : i32
    %c0_i32_0 = arith.constant 0 : i32
    %c0_i32_1 = arith.constant 0 : i32
    return %c0_i32, %c0_i32_0 : i32, i32
  }
  func.func @transform_5(%arg0: i32) -> (i32, i32, i32) {
    %c0_i32 = arith.constant 0 : i32
    %c0_i32_0 = arith.constant 0 : i32
    %c0_i32_1 = arith.constant 0 : i32
    return %arg0, %c0_i32, %c0_i32_0 : i32, i32, i32
  }
  func.func @transform_6(%arg0: i32) -> (i32, i32) {
    %c0_i32 = arith.constant 0 : i32
    %c0_i32_0 = arith.constant 0 : i32
    %c0_i32_1 = arith.constant 0 : i32
    return %c0_i32, %c0_i32_0 : i32, i32
  }
  func.func @transform_7(%arg0: i32) -> (i32, i32) {
    %c0_i32 = arith.constant 0 : i32
    %c0_i32_0 = arith.constant 0 : i32
    %c0_i32_1 = arith.constant 0 : i32
    return %c0_i32, %c0_i32_0 : i32, i32
  }
}

module attributes {stable_mosaic.version = 11 : i64} {
  func.func @_lstm_pool_kernel(%arg0: i32, %arg1: memref<1x8x64xf32, #tpu.memory_space<vmem>>, %arg2: memref<1x8x1xf32, #tpu.memory_space<vmem>>, %arg3: memref<64x256xf32, #tpu.memory_space<vmem>>, %arg4: memref<64x256xf32, #tpu.memory_space<vmem>>, %arg5: memref<1x256xf32, #tpu.memory_space<vmem>>, %arg6: memref<1x8x64xf32, #tpu.memory_space<vmem>>, %arg7: memref<8x64xf32, #tpu.memory_space<vmem>>, %arg8: memref<8x192xf32, #tpu.memory_space<vmem>>, %arg9: memref<8x64xf32, #tpu.memory_space<vmem>>, %arg10: memref<8x64xf32, #tpu.memory_space<vmem>>, %arg11: memref<8x64xf32, #tpu.memory_space<vmem>>, %arg12: memref<8x64xf32, #tpu.memory_space<vmem>>) attributes {dimension_semantics = [#tpu.dimension_semantics<arbitrary>], iteration_bounds = array<i64: 8>, scalar_prefetch = 0 : i64, scratch_operands = 4 : i64, tpu.core_type = #tpu.core_type<tc>, window_params = [{transform_indices = @transform_0, window_bounds = array<i64: 1, 8, 64>}, {transform_indices = @transform_1, window_bounds = array<i64: 1, 8, 1>}, {pipeline_mode = #tpu.pipeline_mode<synchronous>, transform_indices = @transform_2, window_bounds = array<i64: 64, 256>}, {pipeline_mode = #tpu.pipeline_mode<synchronous>, transform_indices = @transform_3, window_bounds = array<i64: 64, 256>}, {pipeline_mode = #tpu.pipeline_mode<synchronous>, transform_indices = @transform_4, window_bounds = array<i64: 1, 256>}, {transform_indices = @transform_5, window_bounds = array<i64: 1, 8, 64>}, {pipeline_mode = #tpu.pipeline_mode<synchronous>, transform_indices = @transform_6, window_bounds = array<i64: 8, 64>}, {pipeline_mode = #tpu.pipeline_mode<synchronous>, transform_indices = @transform_7, window_bounds = array<i64: 8, 192>}]} {
    %c0_i32 = arith.constant 0 : i32
    %0 = arith.cmpi eq, %arg0, %c0_i32 : i32
    %1 = arith.extui %0 : i1 to i32
    %c0_i32_0 = arith.constant 0 : i32
    %2 = arith.cmpi ne, %1, %c0_i32_0 : i32
    scf.if %2 {
      %cst_38 = arith.constant 0.000000e+00 : f32
      %72 = vector.broadcast %cst_38 : f32 to vector<8x64xf32>
      %c0_39 = arith.constant 0 : index
      %c0_40 = arith.constant 0 : index
      %73 = vector.load %arg9[%c0_39, %c0_40] : memref<8x64xf32, #tpu.memory_space<vmem>>, vector<8x64xf32>
      tpu.vector_store %arg9[%c0_39, %c0_40], %72 {strides = array<i32>} : memref<8x64xf32, #tpu.memory_space<vmem>>, vector<8x64xf32>,
      %cst_41 = arith.constant 0.000000e+00 : f32
      %74 = vector.broadcast %cst_41 : f32 to vector<8x64xf32>
      %c0_42 = arith.constant 0 : index
      %c0_43 = arith.constant 0 : index
      %75 = vector.load %arg10[%c0_42, %c0_43] : memref<8x64xf32, #tpu.memory_space<vmem>>, vector<8x64xf32>
      tpu.vector_store %arg10[%c0_42, %c0_43], %74 {strides = array<i32>} : memref<8x64xf32, #tpu.memory_space<vmem>>, vector<8x64xf32>,
      %cst_44 = arith.constant 0.000000e+00 : f32
      %76 = vector.broadcast %cst_44 : f32 to vector<8x64xf32>
      %c0_45 = arith.constant 0 : index
      %c0_46 = arith.constant 0 : index
      %77 = vector.load %arg11[%c0_45, %c0_46] : memref<8x64xf32, #tpu.memory_space<vmem>>, vector<8x64xf32>
      tpu.vector_store %arg11[%c0_45, %c0_46], %76 {strides = array<i32>} : memref<8x64xf32, #tpu.memory_space<vmem>>, vector<8x64xf32>,
      %cst_47 = arith.constant 0xFF800000 : f32
      %78 = vector.broadcast %cst_47 : f32 to vector<8x64xf32>
      %c0_48 = arith.constant 0 : index
      %c0_49 = arith.constant 0 : index
      %79 = vector.load %arg12[%c0_48, %c0_49] : memref<8x64xf32, #tpu.memory_space<vmem>>, vector<8x64xf32>
      tpu.vector_store %arg12[%c0_48, %c0_49], %78 {strides = array<i32>} : memref<8x64xf32, #tpu.memory_space<vmem>>, vector<8x64xf32>,
    } else {
    }
    %c0 = arith.constant 0 : index
    %c0_1 = arith.constant 0 : index
    %c0_2 = arith.constant 0 : index
    %3 = vector.load %arg1[%c0, %c0_1, %c0_2] : memref<1x8x64xf32, #tpu.memory_space<vmem>>, vector<1x8x64xf32>
    %4 = vector.shape_cast %3 : vector<1x8x64xf32> to vector<8x64xf32>
    %c0_3 = arith.constant 0 : index
    %c0_4 = arith.constant 0 : index
    %c0_5 = arith.constant 0 : index
    %5 = vector.load %arg2[%c0_3, %c0_4, %c0_5] : memref<1x8x1xf32, #tpu.memory_space<vmem>>, vector<1x8x1xf32>
    %6 = vector.shape_cast %5 : vector<1x8x1xf32> to vector<8x1xf32>
    %c0_6 = arith.constant 0 : index
    %c0_7 = arith.constant 0 : index
    %7 = vector.load %arg9[%c0_6, %c0_7] : memref<8x64xf32, #tpu.memory_space<vmem>>, vector<8x64xf32>
    %c0_8 = arith.constant 0 : index
    %c0_9 = arith.constant 0 : index
    %8 = vector.load %arg10[%c0_8, %c0_9] : memref<8x64xf32, #tpu.memory_space<vmem>>, vector<8x64xf32>
    %c0_10 = arith.constant 0 : index
    %c0_11 = arith.constant 0 : index
    %9 = vector.load %arg3[%c0_10, %c0_11] : memref<64x256xf32, #tpu.memory_space<vmem>>, vector<64x256xf32>
    %cst = arith.constant dense<0.000000e+00> : vector<8x256xf32>
    %10 = tpu.matmul %4, %9, %cst {dimension_numbers = #tpu.dot_dimension_numbers<[1], [0], [0], [1], [0, 0, 1, 1], [], []>} : vector<8x64xf32>, vector<64x256xf32>, vector<8x256xf32> -> vector<8x256xf32>
    %c0_12 = arith.constant 0 : index
    %c0_13 = arith.constant 0 : index
    %11 = vector.load %arg4[%c0_12, %c0_13] : memref<64x256xf32, #tpu.memory_space<vmem>>, vector<64x256xf32>
    %cst_14 = arith.constant dense<0.000000e+00> : vector<8x256xf32>
    %12 = tpu.matmul %7, %11, %cst_14 {dimension_numbers = #tpu.dot_dimension_numbers<[1], [0], [0], [1], [0, 0, 1, 1], [], []>} : vector<8x64xf32>, vector<64x256xf32>, vector<8x256xf32> -> vector<8x256xf32>
    %13 = arith.addf %10, %12 : vector<8x256xf32>
    %c0_15 = arith.constant 0 : index
    %c0_16 = arith.constant 0 : index
    %14 = vector.load %arg5[%c0_15, %c0_16] : memref<1x256xf32, #tpu.memory_space<vmem>>, vector<1x256xf32>
    %15 = vector.broadcast %14 : vector<1x256xf32> to vector<8x256xf32>
    %16 = arith.addf %13, %15 : vector<8x256xf32>
    %17 = vector.extract_strided_slice %16 {offsets = [0, 0], sizes = [8, 64], strides = [1, 1]} : vector<8x256xf32> to vector<8x64xf32>
    %18 = arith.negf %17 : vector<8x64xf32>
    %19 = math.exp %18 : vector<8x64xf32>
    %cst_17 = arith.constant 1.000000e+00 : f32
    %20 = vector.broadcast %cst_17 : f32 to vector<8x64xf32>
    %21 = arith.addf %20, %19 : vector<8x64xf32>
    %22 = arith.divf %20, %21 : vector<8x64xf32>
    %23 = vector.extract_strided_slice %16 {offsets = [0, 64], sizes = [8, 64], strides = [1, 1]} : vector<8x256xf32> to vector<8x64xf32>
    %24 = arith.negf %23 : vector<8x64xf32>
    %25 = math.exp %24 : vector<8x64xf32>
    %cst_18 = arith.constant 1.000000e+00 : f32
    %26 = vector.broadcast %cst_18 : f32 to vector<8x64xf32>
    %27 = arith.addf %26, %25 : vector<8x64xf32>
    %28 = arith.divf %26, %27 : vector<8x64xf32>
    %29 = vector.extract_strided_slice %16 {offsets = [0, 128], sizes = [8, 64], strides = [1, 1]} : vector<8x256xf32> to vector<8x64xf32>
    %30 = math.tanh %29 : vector<8x64xf32>
    %31 = vector.extract_strided_slice %16 {offsets = [0, 192], sizes = [8, 64], strides = [1, 1]} : vector<8x256xf32> to vector<8x64xf32>
    %32 = arith.negf %31 : vector<8x64xf32>
    %33 = math.exp %32 : vector<8x64xf32>
    %cst_19 = arith.constant 1.000000e+00 : f32
    %34 = vector.broadcast %cst_19 : f32 to vector<8x64xf32>
    %35 = arith.addf %34, %33 : vector<8x64xf32>
    %36 = arith.divf %34, %35 : vector<8x64xf32>
    %37 = arith.mulf %28, %8 : vector<8x64xf32>
    %38 = arith.mulf %22, %30 : vector<8x64xf32>
    %39 = arith.addf %37, %38 : vector<8x64xf32>
    %40 = math.tanh %39 : vector<8x64xf32>
    %41 = arith.mulf %36, %40 : vector<8x64xf32>
    %42 = vector.broadcast %6 : vector<8x1xf32> to vector<8x64xf32>
    %43 = arith.mulf %42, %39 : vector<8x64xf32>
    %cst_20 = arith.constant 1.000000e+00 : f32
    %44 = vector.broadcast %cst_20 : f32 to vector<8x1xf32>
    %45 = arith.subf %44, %6 : vector<8x1xf32>
    %46 = vector.broadcast %45 : vector<8x1xf32> to vector<8x64xf32>
    %47 = arith.mulf %46, %8 : vector<8x64xf32>
    %48 = arith.addf %43, %47 : vector<8x64xf32>
    %c0_21 = arith.constant 0 : index
    %c0_22 = arith.constant 0 : index
    %49 = vector.load %arg10[%c0_21, %c0_22] : memref<8x64xf32, #tpu.memory_space<vmem>>, vector<8x64xf32>
    tpu.vector_store %arg10[%c0_21, %c0_22], %48 {strides = array<i32>} : memref<8x64xf32, #tpu.memory_space<vmem>>, vector<8x64xf32>,
    %50 = vector.broadcast %6 : vector<8x1xf32> to vector<8x64xf32>
    %51 = arith.mulf %50, %41 : vector<8x64xf32>
    %cst_23 = arith.constant 1.000000e+00 : f32
    %52 = vector.broadcast %cst_23 : f32 to vector<8x1xf32>
    %53 = arith.subf %52, %6 : vector<8x1xf32>
    %54 = vector.broadcast %53 : vector<8x1xf32> to vector<8x64xf32>
    %55 = arith.mulf %54, %7 : vector<8x64xf32>
    %56 = arith.addf %51, %55 : vector<8x64xf32>
    %c0_24 = arith.constant 0 : index
    %c0_25 = arith.constant 0 : index
    %57 = vector.load %arg9[%c0_24, %c0_25] : memref<8x64xf32, #tpu.memory_space<vmem>>, vector<8x64xf32>
    tpu.vector_store %arg9[%c0_24, %c0_25], %56 {strides = array<i32>} : memref<8x64xf32, #tpu.memory_space<vmem>>, vector<8x64xf32>,
    %58 = vector.broadcast %6 : vector<8x1xf32> to vector<8x64xf32>
    %59 = arith.mulf %58, %41 : vector<8x64xf32>
    %c0_26 = arith.constant 0 : index
    %c0_27 = arith.constant 0 : index
    %c0_28 = arith.constant 0 : index
    %60 = vector.load %arg6[%c0_26, %c0_27, %c0_28] : memref<1x8x64xf32, #tpu.memory_space<vmem>>, vector<1x8x64xf32>
    %61 = vector.shape_cast %60 : vector<1x8x64xf32> to vector<8x64xf32>
    %62 = vector.shape_cast %59 : vector<8x64xf32> to vector<1x8x64xf32>
    tpu.vector_store %arg6[%c0_26, %c0_27, %c0_28], %62 {strides = array<i32>} : memref<1x8x64xf32, #tpu.memory_space<vmem>>, vector<1x8x64xf32>,
    %c0_29 = arith.constant 0 : index
    %c0_30 = arith.constant 0 : index
    %63 = vector.load %arg11[%c0_29, %c0_30] : memref<8x64xf32, #tpu.memory_space<vmem>>, vector<8x64xf32>
    %64 = arith.addf %63, %59 : vector<8x64xf32>
    %c0_31 = arith.constant 0 : index
    %c0_32 = arith.constant 0 : index
    %65 = vector.load %arg11[%c0_31, %c0_32] : memref<8x64xf32, #tpu.memory_space<vmem>>, vector<8x64xf32>
    tpu.vector_store %arg11[%c0_31, %c0_32], %64 {strides = array<i32>} : memref<8x64xf32, #tpu.memory_space<vmem>>, vector<8x64xf32>,
    %c0_33 = arith.constant 0 : index
    %c0_34 = arith.constant 0 : index
    %66 = vector.load %arg12[%c0_33, %c0_34] : memref<8x64xf32, #tpu.memory_space<vmem>>, vector<8x64xf32>
    %67 = arith.maximumf %66, %59 : vector<8x64xf32>
    %c0_35 = arith.constant 0 : index
    %c0_36 = arith.constant 0 : index
    %68 = vector.load %arg12[%c0_35, %c0_36] : memref<8x64xf32, #tpu.memory_space<vmem>>, vector<8x64xf32>
    tpu.vector_store %arg12[%c0_35, %c0_36], %67 {strides = array<i32>} : memref<8x64xf32, #tpu.memory_space<vmem>>, vector<8x64xf32>,
    %c7_i32 = arith.constant 7 : i32
    %69 = arith.cmpi eq, %arg0, %c7_i32 : i32
    %70 = arith.extui %69 : i1 to i32
    %c0_i32_37 = arith.constant 0 : i32
    %71 = arith.cmpi ne, %70, %c0_i32_37 : i32
    scf.if %71 {
      %c0_38 = arith.constant 0 : index
      %c0_39 = arith.constant 0 : index
      %72 = vector.load %arg9[%c0_38, %c0_39] : memref<8x64xf32, #tpu.memory_space<vmem>>, vector<8x64xf32>
      %c0_40 = arith.constant 0 : index
      %c0_41 = arith.constant 0 : index
      %73 = vector.load %arg7[%c0_40, %c0_41] : memref<8x64xf32, #tpu.memory_space<vmem>>, vector<8x64xf32>
      tpu.vector_store %arg7[%c0_40, %c0_41], %72 {strides = array<i32>} : memref<8x64xf32, #tpu.memory_space<vmem>>, vector<8x64xf32>,
      %c0_42 = arith.constant 0 : index
      %c0_43 = arith.constant 0 : index
      %74 = vector.load %arg9[%c0_42, %c0_43] : memref<8x64xf32, #tpu.memory_space<vmem>>, vector<8x64xf32>
      %c0_44 = arith.constant 0 : index
      %c0_45 = arith.constant 0 : index
      %75 = vector.load %arg8[%c0_44, %c0_45] : memref<8x192xf32, #tpu.memory_space<vmem>>, vector<8x64xf32>
      tpu.vector_store %arg8[%c0_44, %c0_45], %74 {strides = array<i32>} : memref<8x192xf32, #tpu.memory_space<vmem>>, vector<8x64xf32>,
      %c0_46 = arith.constant 0 : index
      %c0_47 = arith.constant 0 : index
      %76 = vector.load %arg11[%c0_46, %c0_47] : memref<8x64xf32, #tpu.memory_space<vmem>>, vector<8x64xf32>
      %cst_48 = arith.constant 1.250000e-01 : f32
      %77 = vector.broadcast %cst_48 : f32 to vector<8x64xf32>
      %78 = arith.mulf %76, %77 : vector<8x64xf32>
      %c0_49 = arith.constant 0 : index
      %c64 = arith.constant 64 : index
      %79 = vector.load %arg8[%c0_49, %c64] : memref<8x192xf32, #tpu.memory_space<vmem>>, vector<8x64xf32>
      tpu.vector_store %arg8[%c0_49, %c64], %78 {strides = array<i32>} : memref<8x192xf32, #tpu.memory_space<vmem>>, vector<8x64xf32>,
      %c0_50 = arith.constant 0 : index
      %c0_51 = arith.constant 0 : index
      %80 = vector.load %arg12[%c0_50, %c0_51] : memref<8x64xf32, #tpu.memory_space<vmem>>, vector<8x64xf32>
      %c0_52 = arith.constant 0 : index
      %c128 = arith.constant 128 : index
      %81 = vector.load %arg8[%c0_52, %c128] : memref<8x192xf32, #tpu.memory_space<vmem>>, vector<8x64xf32>
      tpu.vector_store %arg8[%c0_52, %c128], %80 {strides = array<i32>} : memref<8x192xf32, #tpu.memory_space<vmem>>, vector<8x64xf32>,
    } else {
    }
    return
  }
  func.func @transform_0(%arg0: i32) -> (i32, i32, i32) {
    %c0_i32 = arith.constant 0 : i32
    %c0_i32_0 = arith.constant 0 : i32
    %c0_i32_1 = arith.constant 0 : i32
    return %arg0, %c0_i32, %c0_i32_0 : i32, i32, i32
  }
  func.func @transform_1(%arg0: i32) -> (i32, i32, i32) {
    %c0_i32 = arith.constant 0 : i32
    %c0_i32_0 = arith.constant 0 : i32
    %c0_i32_1 = arith.constant 0 : i32
    return %arg0, %c0_i32, %c0_i32_0 : i32, i32, i32
  }
  func.func @transform_2(%arg0: i32) -> (i32, i32) {
    %c0_i32 = arith.constant 0 : i32
    %c0_i32_0 = arith.constant 0 : i32
    %c0_i32_1 = arith.constant 0 : i32
    return %c0_i32, %c0_i32_0 : i32, i32
  }
  func.func @transform_3(%arg0: i32) -> (i32, i32) {
    %c0_i32 = arith.constant 0 : i32
    %c0_i32_0 = arith.constant 0 : i32
    %c0_i32_1 = arith.constant 0 : i32
    return %c0_i32, %c0_i32_0 : i32, i32
  }
  func.func @transform_4(%arg0: i32) -> (i32, i32) {
    %c0_i32 = arith.constant 0 : i32
    %c0_i32_0 = arith.constant 0 : i32
    %c0_i32_1 = arith.constant 0 : i32
    return %c0_i32, %c0_i32_0 : i32, i32
  }
  func.func @transform_5(%arg0: i32) -> (i32, i32, i32) {
    %c0_i32 = arith.constant 0 : i32
    %c0_i32_0 = arith.constant 0 : i32
    %c0_i32_1 = arith.constant 0 : i32
    return %arg0, %c0_i32, %c0_i32_0 : i32, i32, i32
  }
  func.func @transform_6(%arg0: i32) -> (i32, i32) {
    %c0_i32 = arith.constant 0 : i32
    %c0_i32_0 = arith.constant 0 : i32
    %c0_i32_1 = arith.constant 0 : i32
    return %c0_i32, %c0_i32_0 : i32, i32
  }
  func.func @transform_7(%arg0: i32) -> (i32, i32) {
    %c0_i32 = arith.constant 0 : i32
    %c0_i32_0 = arith.constant 0 : i32
    %c0_i32_1 = arith.constant 0 : i32
    return %c0_i32, %c0_i32_0 : i32, i32
  }
}

</mosaic_0001>

<llo_original>
// kernel: lm_forward.3
$region0: #{lm_forward.3}
  #allocation0 [shape = 'u32[]', space=smem, size = 0x4, offset = 0x4, fixed_abs, tag = 'smem constant byte address 0x4 - core index']
  #allocation1 [shape = 'u32[144,128]{1,0:T(1,128)}', space=vmem, size = 0x12000, scoped, tag = 'internal scratch']
  %s0 = inlined_call_operand.vmem [shape: s32[64,1], index: 0, kind: input, shape index: {}]
  %s1 = inlined_call_operand.vmem [shape: f32[32,64], index: 1, kind: input, shape index: {}]
  %s2 = inlined_call_operand.vmem [shape: f32[64,64], index: 2, kind: output, shape index: {}]
  %s3 = sld [smem:[#allocation0]]
  $region18: #{lm_forward.3} parent=0
    _
  %s5 = ssub.s32 1, %s3
  %s6 = scalar_select 0, %s5, %s3
  // Predicated region
  $region2: #{lm_forward.3} parent=0 // pred_check
    _
  $region3: #{lm_forward.3} parent=0 // pred_check_branch
    %8 = sbr.rel (0) target = $region5
  $region4: #{lm_forward.3} parent=0 // pred_region
    _
  $region5: #{lm_forward.3} parent=0 // pred_fallthru
    _
  // Predicated region
  $region6: #{lm_forward.3} parent=0 // pred_check
    _
  $region7: #{lm_forward.3} parent=0 // pred_check_branch
    %10 = sbr.rel (0) target = $region9
  $region8: #{lm_forward.3} parent=0 // pred_region
    _
  $region9: #{lm_forward.3} parent=0 // pred_fallthru
    _
  %v11 = vld [vmem:[%s0] sm:$0xff]
  %v12 = vld [vmem:[%s0 + $0x8] sm:$0xff]
  %v13 = vld [vmem:[%s0 + $0x10] sm:$0xff]
  %v14 = vld [vmem:[%s0 + $0x18] sm:$0xff]
  %v15 = vld [vmem:[%s0 + $0x20] sm:$0xff]
  %v16 = vld [vmem:[%s0 + $0x28] sm:$0xff]
  %v17 = vld [vmem:[%s0 + $0x30] sm:$0xff]
  %v18 = vld [vmem:[%s0 + $0x38] sm:$0xff]
  %v19 = vlaneseq
  %v20 = vand.u32 %v19, 127
  %21 = vset.pattern.permute.xlu0 0
  %22 = vperm.xlu0 %21, %v11
  %v23 = vpop.permute.xlu0 %22
  %24 = vset.pattern.permute.xlu0 0
  %25 = vperm.xlu0 %24, %v12
  %v26 = vpop.permute.xlu0 %25
  %27 = vset.pattern.permute.xlu0 0
  %28 = vperm.xlu0 %27, %v13
  %v29 = vpop.permute.xlu0 %28
  %30 = vset.pattern.permute.xlu0 0
  %31 = vperm.xlu0 %30, %v14
  %v32 = vpop.permute.xlu0 %31
  %33 = vset.pattern.permute.xlu0 0
  %34 = vperm.xlu0 %33, %v15
  %v35 = vpop.permute.xlu0 %34
  %36 = vset.pattern.permute.xlu0 0
  %37 = vperm.xlu0 %36, %v16
  %v38 = vpop.permute.xlu0 %37
  %39 = vset.pattern.permute.xlu0 0
  %40 = vperm.xlu0 %39, %v17
  %v41 = vpop.permute.xlu0 %40
  %42 = vset.pattern.permute.xlu0 0
  %43 = vperm.xlu0 %42, %v18
  %v44 = vpop.permute.xlu0 %43
  %vm45 = vcmp.eq.s32.totalorder %v20, %v23
  %vm46 = vcmp.eq.s32.totalorder %v20, %v26
  %vm47 = vcmp.eq.s32.totalorder %v20, %v29
  %vm48 = vcmp.eq.s32.totalorder %v20, %v32
  %vm49 = vcmp.eq.s32.totalorder %v20, %v35
  %vm50 = vcmp.eq.s32.totalorder %v20, %v38
  %vm51 = vcmp.eq.s32.totalorder %v20, %v41
  %vm52 = vcmp.eq.s32.totalorder %v20, %v44
  %v53 = vsel %vm45, 1, 0
  %v54 = vsel %vm46, 1, 0
  %v55 = vsel %vm47, 1, 0
  %v56 = vsel %vm48, 1, 0
  %v57 = vsel %vm49, 1, 0
  %v58 = vsel %vm50, 1, 0
  %v59 = vsel %vm51, 1, 0
  %v60 = vsel %vm52, 1, 0
  %v61 = vcvt.s32.f32 %v53
  %v62 = vcvt.s32.f32 %v54
  %v63 = vcvt.s32.f32 %v55
  %v64 = vcvt.s32.f32 %v56
  %v65 = vcvt.s32.f32 %v57
  %v66 = vcvt.s32.f32 %v58
  %v67 = vcvt.s32.f32 %v59
  %v68 = vcvt.s32.f32 %v60
  %v69 = vld [vmem:[%s1] sm:$0xff]
  %v70 = vld [vmem:[%s1 + $0x8] sm:$0xff]
  %v71 = vld [vmem:[%s1 + $0x10] sm:$0xff]
  %v72 = vld [vmem:[%s1 + $0x18] sm:$0xff]
  %vm73 = vcmask 261120
  %v75 = vsel %vm73, %v61, 0
  %v78 = vsel %vm73, %v62, 0
  %v81 = vsel %vm73, %v63, 0
  %v84 = vsel %vm73, %v64, 0
  %v87 = vsel %vm73, %v65, 0
  %v90 = vsel %vm73, %v66, 0
  %v93 = vsel %vm73, %v67, 0
  %v96 = vsel %vm73, %v68, 0
  %98 = vmatprep.subr.mxu0 0.0
  %99 = vmatpush1.msra.mxu0 %v69
  %100 = vmatprep.subr.mxu0 0.0
  %101 = vmatpush1.msra.mxu0 %v70
  %102 = vmatprep.subr.mxu0 0.0
  %103 = vmatpush1.msra.mxu0 %v71
  %104 = vmatprep.subr.mxu0 0.0
  %105 = vmatpush1.msra.mxu0 %v72
  %106 = vmatprep.subr.mxu0 0.0
  %107 = vmatpush1.msra.mxu0 0.0
  %108 = vmatprep.subr.mxu0 0.0
  %109 = vmatpush1.msra.mxu0 0.0
  %110 = vmatprep.subr.mxu0 0.0
  %111 = vmatpush1.msra.mxu0 0.0
  %112 = vmatprep.subr.mxu0 0.0
  %113 = vmatpush1.msra.mxu0 0.0
  %114 = vmatprep.subr.mxu0 0.0
  %115 = vmatpush1.msra.mxu0 0.0
  %116 = vmatprep.subr.mxu0 0.0
  %117 = vmatpush1.msra.mxu0 0.0
  %118 = vmatprep.subr.mxu0 0.0
  %119 = vmatpush1.msra.mxu0 0.0
  %120 = vmatprep.subr.mxu0 0.0
  %121 = vmatpush1.msra.mxu0 0.0
  %122 = vmatprep.subr.mxu0 0.0
  %123 = vmatpush1.msra.mxu0 0.0
  %124 = vmatprep.subr.mxu0 0.0
  %125 = vmatpush1.msra.mxu0 0.0
  %126 = vmatprep.subr.mxu0 0.0
  %127 = vmatpush1.msra.mxu0 0.0
  %128 = vmatprep.subr.mxu0 0.0
  %129 = vmatpush1.msra.mxu0 0.0
  %130 = vmatprep.subr.mxu0 0.0
  %131 = vmatpush1.msra.mxu0 0.0
  %132 = vmatprep.subr.mxu0 0.0
  %133 = vmatpush1.msra.mxu0 0.0
  %134 = vmatprep.subr.mxu0 0.0
  %135 = vmatpush1.msra.mxu0 0.0
  %136 = vmatprep.subr.mxu0 0.0
  %137 = vmatpush1.msra.mxu0 0.0
  %138 = vmatprep.subr.mxu0 0.0
  %139 = vmatpush1.msra.mxu0 0.0
  %140 = vmatprep.subr.mxu0 0.0
  %141 = vmatpush1.msra.mxu0 0.0
  %142 = vmatprep.subr.mxu0 0.0
  %143 = vmatpush1.msra.mxu0 0.0
  %144 = vmatprep.subr.mxu0 0.0
  %145 = vmatpush1.msra.mxu0 0.0
  %146 = vmatprep.subr.mxu0 0.0
  %147 = vmatpush1.msra.mxu0 0.0
  %148 = vmatprep.subr.mxu0 0.0
  %149 = vmatpush1.msra.mxu0 0.0
  %150 = vmatprep.subr.mxu0 0.0
  %151 = vmatpush1.msra.mxu0 0.0
  %152 = vmatprep.subr.mxu0 0.0
  %153 = vmatpush1.msra.mxu0 0.0
  %154 = vmatprep.subr.mxu0 0.0
  %155 = vmatpush1.msra.mxu0 0.0
  %156 = vmatprep.subr.mxu0 0.0
  %157 = vmatpush1.msra.mxu0 0.0
  %158 = vmatprep.subr.mxu0 0.0
  %159 = vmatpush1.msra.mxu0 0.0
  %160 = vmatprep.subr.mxu0 0.0
  %161 = vmatpush1.msra.mxu0 0.0
  %162 = vmatprep.mubr.f32.mxu0 0.0
  %163 = vmatmul.mubr.f32.gmra.mrb[0].mxu0 %v75
  %v164 = vpop.f32.mrb[0].mxu0
  %v165 = vadd.f32 0.0, %v164
  %v166 = vpop.f32.mrb[0].mxu0
  %167 = vmatprep.mubr.f32.mxu0 0.0
  %168 = vmatmul.mubr.f32.gmra.mrb[0].mxu0 %v78
  %v169 = vpop.f32.mrb[0].mxu0
  %v170 = vadd.f32 0.0, %v169
  %v171 = vpop.f32.mrb[0].mxu0
  %172 = vmatprep.mubr.f32.mxu0 0.0
  %173 = vmatmul.mubr.f32.gmra.mrb[0].mxu0 %v81
  %v174 = vpop.f32.mrb[0].mxu0
  %v175 = vadd.f32 0.0, %v174
  %v176 = vpop.f32.mrb[0].mxu0
  %177 = vmatprep.mubr.f32.mxu0 0.0
  %178 = vmatmul.mubr.f32.gmra.mrb[0].mxu0 %v84
  %v179 = vpop.f32.mrb[0].mxu0
  %v180 = vadd.f32 0.0, %v179
  %v181 = vpop.f32.mrb[0].mxu0
  %182 = vmatprep.mubr.f32.mxu0 0.0
  %183 = vmatmul.mubr.f32.gmra.mrb[0].mxu0 %v87
  %v184 = vpop.f32.mrb[0].mxu0
  %v185 = vadd.f32 0.0, %v184
  %v186 = vpop.f32.mrb[0].mxu0
  %187 = vmatprep.mubr.f32.mxu0 0.0
  %188 = vmatmul.mubr.f32.gmra.mrb[0].mxu0 %v90
  %v189 = vpop.f32.mrb[0].mxu0
  %v190 = vadd.f32 0.0, %v189
  %v191 = vpop.f32.mrb[0].mxu0
  %192 = vmatprep.mubr.f32.mxu0 0.0
  %193 = vmatmul.mubr.f32.gmra.mrb[0].mxu0 %v93
  %v194 = vpop.f32.mrb[0].mxu0
  %v195 = vadd.f32 0.0, %v194
  %v196 = vpop.f32.mrb[0].mxu0
  %197 = vmatprep.mubr.f32.mxu0 0.0
  %198 = vmatmul.mubr.f32.gmra.mrb[0].mxu0 %v96
  %v199 = vpop.f32.mrb[0].mxu0
  %v200 = vadd.f32 0.0, %v199
  %v201 = vpop.f32.mrb[0].mxu0
  %202 = vdwg.mxu0
  %vm203 = vcmask 523264
  %204 = vst.msk [vmem:[%s2] sm:$0xff] %vm203, %v165
  %205 = vst.msk [vmem:[%s2 + $0x8] sm:$0xff] %vm203, %v170
  %206 = vst.msk [vmem:[%s2 + $0x10] sm:$0xff] %vm203, %v175
  %207 = vst.msk [vmem:[%s2 + $0x18] sm:$0xff] %vm203, %v180
  %208 = vst.msk [vmem:[%s2 + $0x20] sm:$0xff] %vm203, %v185
  %209 = vst.msk [vmem:[%s2 + $0x28] sm:$0xff] %vm203, %v190
  %210 = vst.msk [vmem:[%s2 + $0x30] sm:$0xff] %vm203, %v195
  %211 = vst.msk [vmem:[%s2 + $0x38] sm:$0xff] %vm203, %v200
  // Predicated region
  $region10: #{lm_forward.3} parent=0 // pred_check
    _
  $region11: #{lm_forward.3} parent=0 // pred_check_branch
    %213 = sbr.rel (0) target = $region13
  $region12: #{lm_forward.3} parent=0 // pred_region
    _
  $region13: #{lm_forward.3} parent=0 // pred_fallthru
    _
  // Predicated region
  $region14: #{lm_forward.3} parent=0 // pred_check
    _
  $region15: #{lm_forward.3} parent=0 // pred_check_branch
    %215 = sbr.rel (0) target = $region17
  $region16: #{lm_forward.3} parent=0 // pred_region
    _
  $region17: #{lm_forward.3} parent=0 // pred_fallthru
    _

// kernel: lm_forward.4
$region0: #{lm_forward.4}
  #allocation0 [shape = 'u32[]', space=smem, size = 0x4, offset = 0x4, fixed_abs, tag = 'smem constant byte address 0x4 - core index']
  #allocation1 [shape = 'u32[144,128]{1,0:T(1,128)}', space=vmem, size = 0x12000, scoped, tag = 'internal scratch']
  #allocation2 [shape = 'f32[8,64]{1,0:T(8,128)}', space=vmem, size = 0x1000, scoped, tag = 'scratch operand']
  #allocation3 [shape = 'f32[8,64]{1,0:T(8,128)}', space=vmem, size = 0x1000, scoped, tag = 'scratch operand']
  #allocation4 [shape = 'f32[8,64]{1,0:T(8,128)}', space=vmem, size = 0x1000, scoped, tag = 'scratch operand']
  #allocation5 [shape = 'f32[8,64]{1,0:T(8,128)}', space=vmem, size = 0x1000, scoped, tag = 'scratch operand']
  %s0 = inlined_call_operand.vmem [shape: f32[8,8,64], index: 0, kind: input, shape index: {}]
  %s1 = inlined_call_operand.vmem [shape: f32[8,8,1], index: 1, kind: input, shape index: {}]
  %s2 = inlined_call_operand.vmem [shape: f32[64,256], index: 2, kind: input, shape index: {}]
  %s3 = inlined_call_operand.vmem [shape: f32[64,256], index: 3, kind: input, shape index: {}]
  %s4 = inlined_call_operand.vmem [shape: f32[1,256], index: 4, kind: input, shape index: {}]
  %s5 = inlined_call_operand.vmem [shape: f32[8,8,64], index: 5, kind: output, shape index: {0}]
  %s6 = inlined_call_operand.hbm [shape: f32[8,64], index: 6, kind: output, shape index: {1}]
  %s7 = inlined_call_operand.hbm [shape: f32[8,192], index: 7, kind: output, shape index: {2}]
  %8 = xla_tuple %s5, %s6, %s7
  %s9 = sld [smem:[#allocation0]]
  $region77: #{lm_forward.4} parent=0
    _
  %s11 = ssub.s32 1, %s9
  %s12 = scalar_select 0, %s11, %s9
  $region1: #{lm_forward.4} parent=0
    #allocation6 [shape = 'u8[4096]{0}', space=vmem, size = 0x1000, scoped, tag = 'output window, operand 1, single buffered']
    #allocation7 [shape = 's32[2]{0}', space=sflag, size = 0x8, scoped, tag = 'scoped memory for lm_forward.4']
    #allocation8 [shape = 'u8[8192]{0}', space=vmem, size = 0x2000, scoped, tag = 'output window, operand 2, single buffered']
    #allocation9 [shape = 's32[1]{0}', space=sflag, size = 0x4, scoped, tag = 'scoped memory for lm_forward.4']
    %13 = vsyncpa [#allocation7], 0
    %14 = vsyncpa [#allocation9], 0
    loop: start=0, step=1, limit=10
    $region2: #{lm_forward.4} parent=1 // loop_pre_header
      _
    $region3: #{lm_forward.4} parent=1 // loop_header
      %s16 = sphi 0, %s20
      %p17 = scmp.ge.s32.totalorder %s16, 10
      %s26 = sphi 0, %s28
      %s29 = sphi 0, %s26
      %s30 = sphi 0, %s29
      %s46 = sphi 0, %s30
      %s52 = sphi 0, %s54
      %s55 = sphi 0, %s52
      %s56 = sphi 0, %s55
      %s72 = sphi 0, %s56
      %s76 = sphi 0, %s76
      %s78 = sphi 0, %s76
      %s79 = sphi 0, %s78
      %s93 = sphi 0, %s79
      %s97 = sphi 0, %s97
      %s99 = sphi 0, %s97
      %s100 = sphi 0, %s99
      %s114 = sphi 0, %s100
      %s118 = sphi 0, %s118
      %s120 = sphi 0, %s118
      %s121 = sphi 0, %s120
      %s135 = sphi 0, %s121
      %s141 = sphi 0, %s143
      %s144 = sphi 0, %s141
      %s145 = sphi 0, %s144
      %s161 = sphi 0, %s145
      %s165 = sphi 0, %s165
      %s167 = sphi 0, %s165
      %s168 = sphi 0, %s167
      %s182 = sphi 0, %s168
      %s186 = sphi 0, %s186
      %s188 = sphi 0, %s186
      %s189 = sphi 0, %s188
      %s203 = sphi 0, %s189
    $region4: #{lm_forward.4} parent=1 // loop_header_branch
      %19 = sbr.rel (%p17) target = $region8
    $region5: #{lm_forward.4} parent=1 // loop_body
      %s21 = ssub.s32 %s16, 1
      %s22 = ssub.s32 %s16, 2
      %s23 = sadd.s32 %s16, 1
      %s24 = ssub.s32 %s16, %s23
      %p25 = scmp.eq.s32.totalorder %s24, 0
      %s27 = sadd.s32 %s26, 1
      %s28 = scalar_select %p25, %s26, %s27
      %p31 = pneg %p25
      %p32 = scmp.eq.s32.totalorder %s16, 7
      %p33 = por %p31, %p32
      %p34 = scmp.ne.s32.totalorder %s26, %s29
      %p35 = scmp.eq.s32.totalorder %s16, 0
      %p36 = por %p34, %p35
      %p37 = scmp.ne.s32.totalorder %s26, %s29
      %p38 = scmp.eq.s32.totalorder %s21, 7
      %p39 = por %p37, %p38
      %p40 = scmp.ne.s32.totalorder %s29, %s30
      %p41 = scmp.eq.s32.totalorder %s21, 0
      %p42 = por %p40, %p41
      %p43 = scmp.ne.s32.totalorder %s29, %s30
      %p44 = scmp.eq.s32.totalorder %s22, 7
      %p45 = por %p43, %p44
      %p47 = scmp.ne.s32.totalorder %s30, %s46
      %p48 = scmp.eq.s32.totalorder %s22, 0
      %p49 = por %p47, %p48
      %s50 = ssub.s32 %s16, %s23
      %p51 = scmp.eq.s32.totalorder %s50, 0
      %s53 = sadd.s32 %s52, 1
      %s54 = scalar_select %p51, %s52, %s53
      %p57 = pneg %p51
      %p58 = scmp.eq.s32.totalorder %s16, 7
      %p59 = por %p57, %p58
      %p60 = scmp.ne.s32.totalorder %s52, %s55
      %p61 = scmp.eq.s32.totalorder %s16, 0
      %p62 = por %p60, %p61
      %p63 = scmp.ne.s32.totalorder %s52, %s55
      %p64 = scmp.eq.s32.totalorder %s21, 7
      %p65 = por %p63, %p64
      %p66 = scmp.ne.s32.totalorder %s55, %s56
      %p67 = scmp.eq.s32.totalorder %s21, 0
      %p68 = por %p66, %p67
      %p69 = scmp.ne.s32.totalorder %s55, %s56
      %p70 = scmp.eq.s32.totalorder %s22, 7
      %p71 = por %p69, %p70
      %p73 = scmp.ne.s32.totalorder %s56, %s72
      %p74 = scmp.eq.s32.totalorder %s22, 0
      %p75 = por %p73, %p74
      %s77 = sadd.s32 %s76, 1
      %p80 = scmp.eq.s32.totalorder %s16, 7
      %p81 = scmp.ne.s32.totalorder %s76, %s78
      %p82 = scmp.eq.s32.totalorder %s16, 0
      %p83 = por %p81, %p82
      %p84 = scmp.ne.s32.totalorder %s76, %s78
      %p85 = scmp.eq.s32.totalorder %s21, 7
      %p86 = por %p84, %p85
      %p87 = scmp.ne.s32.totalorder %s78, %s79
      %p88 = scmp.eq.s32.totalorder %s21, 0
      %p89 = por %p87, %p88
      %p90 = scmp.ne.s32.totalorder %s78, %s79
      %p91 = scmp.eq.s32.totalorder %s22, 7
      %p92 = por %p90, %p91
      %p94 = scmp.ne.s32.totalorder %s79, %s93
      %p95 = scmp.eq.s32.totalorder %s22, 0
      %p96 = por %p94, %p95
      %s98 = sadd.s32 %s97, 1
      %p101 = scmp.eq.s32.totalorder %s16, 7
      %p102 = scmp.ne.s32.totalorder %s97, %s99
      %p103 = scmp.eq.s32.totalorder %s16, 0
      %p104 = por %p102, %p103
      %p105 = scmp.ne.s32.totalorder %s97, %s99
      %p106 = scmp.eq.s32.totalorder %s21, 7
      %p107 = por %p105, %p106
      %p108 = scmp.ne.s32.totalorder %s99, %s100
      %p109 = scmp.eq.s32.totalorder %s21, 0
      %p110 = por %p108, %p109
      %p111 = scmp.ne.s32.totalorder %s99, %s100
      %p112 = scmp.eq.s32.totalorder %s22, 7
      %p113 = por %p111, %p112
      %p115 = scmp.ne.s32.totalorder %s100, %s114
      %p116 = scmp.eq.s32.totalorder %s22, 0
      %p117 = por %p115, %p116
      %s119 = sadd.s32 %s118, 1
      %p122 = scmp.eq.s32.totalorder %s16, 7
      %p123 = scmp.ne.s32.totalorder %s118, %s120
      %p124 = scmp.eq.s32.totalorder %s16, 0
      %p125 = por %p123, %p124
      %p126 = scmp.ne.s32.totalorder %s118, %s120
      %p127 = scmp.eq.s32.totalorder %s21, 7
      %p128 = por %p126, %p127
      %p129 = scmp.ne.s32.totalorder %s120, %s121
      %p130 = scmp.eq.s32.totalorder %s21, 0
      %p131 = por %p129, %p130
      %p132 = scmp.ne.s32.totalorder %s120, %s121
      %p133 = scmp.eq.s32.totalorder %s22, 7
      %p134 = por %p132, %p133
      %p136 = scmp.ne.s32.totalorder %s121, %s135
      %p137 = scmp.eq.s32.totalorder %s22, 0
      %p138 = por %p136, %p137
      %s139 = ssub.s32 %s16, %s23
      %p140 = scmp.eq.s32.totalorder %s139, 0
      %s142 = sadd.s32 %s141, 1
      %s143 = scalar_select %p140, %s141, %s142
      %p146 = pneg %p140
      %p147 = scmp.eq.s32.totalorder %s16, 7
      %p148 = por %p146, %p147
      %p149 = scmp.ne.s32.totalorder %s141, %s144
      %p150 = scmp.eq.s32.totalorder %s16, 0
      %p151 = por %p149, %p150
      %p152 = scmp.ne.s32.totalorder %s141, %s144
      %p153 = scmp.eq.s32.totalorder %s21, 7
      %p154 = por %p152, %p153
      %p155 = scmp.ne.s32.totalorder %s144, %s145
      %p156 = scmp.eq.s32.totalorder %s21, 0
      %p157 = por %p155, %p156
      %p158 = scmp.ne.s32.totalorder %s144, %s145
      %p159 = scmp.eq.s32.totalorder %s22, 7
      %p160 = por %p158, %p159
      %p162 = scmp.ne.s32.totalorder %s145, %s161
      %p163 = scmp.eq.s32.totalorder %s22, 0
      %p164 = por %p162, %p163
      %s166 = sadd.s32 %s165, 1
      %p169 = scmp.eq.s32.totalorder %s16, 7
      %p170 = scmp.ne.s32.totalorder %s165, %s167
      %p171 = scmp.eq.s32.totalorder %s16, 0
      %p172 = por %p170, %p171
      %p173 = scmp.ne.s32.totalorder %s165, %s167
      %p174 = scmp.eq.s32.totalorder %s21, 7
      %p175 = por %p173, %p174
      %p176 = scmp.ne.s32.totalorder %s167, %s168
      %p177 = scmp.eq.s32.totalorder %s21, 0
      %p178 = por %p176, %p177
      %p179 = scmp.ne.s32.totalorder %s167, %s168
      %p180 = scmp.eq.s32.totalorder %s22, 7
      %p181 = por %p179, %p180
      %p183 = scmp.ne.s32.totalorder %s168, %s182
      %p184 = scmp.eq.s32.totalorder %s22, 0
      %p185 = por %p183, %p184
      %s187 = sadd.s32 %s186, 1
      %p190 = scmp.eq.s32.totalorder %s16, 7
      %p191 = scmp.ne.s32.totalorder %s186, %s188
      %p192 = scmp.eq.s32.totalorder %s16, 0
      %p193 = por %p191, %p192
      %p194 = scmp.ne.s32.totalorder %s186, %s188
      %p195 = scmp.eq.s32.totalorder %s21, 7
      %p196 = por %p194, %p195
      %p197 = scmp.ne.s32.totalorder %s188, %s189
      %p198 = scmp.eq.s32.totalorder %s21, 0
      %p199 = por %p197, %p198
      %p200 = scmp.ne.s32.totalorder %s188, %s189
      %p201 = scmp.eq.s32.totalorder %s22, 7
      %p202 = por %p200, %p201
      %p204 = scmp.ne.s32.totalorder %s189, %s203
      %p205 = scmp.eq.s32.totalorder %s22, 0
      %p206 = por %p204, %p205
      %p207 = scmp.le.s32.totalorder 1, %s16
      %p208 = scmp.lt.s32.totalorder %s16, 9
      %p209 = pnand %p207, %p208
      %p210 = pneg %p209
      // Predicated region
      $region9: #{lm_forward.4} parent=5 // pred_check
        _
      $region10: #{lm_forward.4} parent=5 // pred_check_branch
        %212 = sbr.rel (%p209) target = $region12
      $region11: #{lm_forward.4} parent=5 // pred_region
        %s213 = ssub.s32 %s16, 1
        // Predicated region
        $region13: #{lm_forward.4} parent=11 // pred_check
          %p214 = pneg %p89
        $region14: #{lm_forward.4} parent=11 // pred_check_branch
          %216 = sbr.rel (%p214) target = $region16
        $region15: #{lm_forward.4} parent=11 // pred_region
          _
        $region16: #{lm_forward.4} parent=11 // pred_fallthru
          _
        // Predicated region
        $region17: #{lm_forward.4} parent=11 // pred_check
          %p217 = pneg %p110
        $region18: #{lm_forward.4} parent=11 // pred_check_branch
          %219 = sbr.rel (%p217) target = $region20
        $region19: #{lm_forward.4} parent=11 // pred_region
          _
        $region20: #{lm_forward.4} parent=11 // pred_fallthru
          _
        // Predicated region
        $region21: #{lm_forward.4} parent=11 // pred_check
          %p220 = pneg %p131
        $region22: #{lm_forward.4} parent=11 // pred_check_branch
          %222 = sbr.rel (%p220) target = $region24
        $region23: #{lm_forward.4} parent=11 // pred_region
          _
        $region24: #{lm_forward.4} parent=11 // pred_fallthru
          _
      $region12: #{lm_forward.4} parent=5 // pred_fallthru
        _
      %p223 = scmp.lt.s32.totalorder %s16, 8
      // Predicated region
      $region25: #{lm_forward.4} parent=5 // pred_check
        %p224 = pneg %p223
      $region26: #{lm_forward.4} parent=5 // pred_check_branch
        %226 = sbr.rel (%p224) target = $region28
      $region27: #{lm_forward.4} parent=5 // pred_region
        // Predicated region
        $region29: #{lm_forward.4} parent=27 // pred_check
          %p227 = pneg %p36
        $region30: #{lm_forward.4} parent=27 // pred_check_branch
          %229 = sbr.rel (%p227) target = $region32
        $region31: #{lm_forward.4} parent=27 // pred_region
          %p230 = scmp.lt.s32.totalorder %s16, 7
          %s231 = scalar_select %p230, %s16, 7
          %s232 = smul.addr %s231, 8
          %s233 = scalar_lea.vmem %s0, %s232
        $region32: #{lm_forward.4} parent=27 // pred_fallthru
          _
        // Predicated region
        $region33: #{lm_forward.4} parent=27 // pred_check
          %p234 = pneg %p62
        $region34: #{lm_forward.4} parent=27 // pred_check_branch
          %236 = sbr.rel (%p234) target = $region36
        $region35: #{lm_forward.4} parent=27 // pred_region
          %p237 = scmp.lt.s32.totalorder %s16, 7
          %s238 = scalar_select %p237, %s16, 7
          %s239 = smul.addr %s238, 8
          %s240 = scalar_lea.vmem %s1, %s239
        $region36: #{lm_forward.4} parent=27 // pred_fallthru
          _
      $region28: #{lm_forward.4} parent=5 // pred_fallthru
        _
      %p241 = scmp.le.s32.totalorder 1, %s16
      %p242 = scmp.lt.s32.totalorder %s16, 9
      %p243 = pnand %p241, %p242
      %p244 = pneg %p243
      // Predicated region
      $region37: #{lm_forward.4} parent=5 // pred_check
        _
      $region38: #{lm_forward.4} parent=5 // pred_check_branch
        %246 = sbr.rel (%p243) target = $region40
      $region39: #{lm_forward.4} parent=5 // pred_region
        %s247 = ssub.s32 %s16, 1
        %p248 = scmp.lt.s32.totalorder %s21, 7
        %s249 = scalar_select %p248, %s21, 7
        %s250 = smul.addr %s249, 8
        %s251 = scalar_lea.vmem %s0, %s250
        %p252 = pneg %p42
        %p253 = pneg %p39
        %p254 = scmp.lt.s32.totalorder %s21, 7
        %s255 = scalar_select %p254, %s21, 7
        %s256 = smul.addr %s255, 8
        %s257 = scalar_lea.vmem %s1, %s256
        %p258 = pneg %p68
        %p259 = pneg %p65
        %p260 = pneg %p89
        %p261 = pneg %p86
        %p262 = pneg %p110
        %p263 = pneg %p107
        %p264 = pneg %p131
        %p265 = pneg %p128
        %p266 = pneg %p157
        %p267 = pneg %p154
        %p268 = scmp.lt.s32.totalorder %s21, 7
        %s269 = scalar_select %p268, %s21, 7
        %s270 = smul.addr %s269, 8
        %s271 = scalar_lea.vmem %s5, %s270
        %p272 = pneg %p178
        %p273 = pneg %p175
        %p274 = pneg %p199
        %p275 = pneg %p196
        %p276 = scmp.lt.s32.totalorder %s21, 7
        %s277 = scalar_select %p276, %s21, 7
        %s278 = smul.addr %s277, 8
        %s279 = scalar_lea.vmem %s0, %s278
        %p280 = scmp.lt.s32.totalorder %s21, 7
        %s281 = scalar_select %p280, %s21, 7
        %s282 = smul.addr %s281, 8
        %s283 = scalar_lea.vmem %s1, %s282
        %p284 = scmp.lt.s32.totalorder %s21, 7
        %s285 = scalar_select %p284, %s21, 7
        %s286 = smul.addr %s285, 8
        %s287 = scalar_lea.vmem %s5, %s286
        %p288 = scmp.eq.s32.totalorder %s21, 0
        // Predicated region
        $region41: #{lm_forward.4} parent=39 // pred_check
          %p289 = pneg %p288
        $region42: #{lm_forward.4} parent=39 // pred_check_branch
          %291 = sbr.rel (%p289) target = $region44
        $region43: #{lm_forward.4} parent=39 // pred_region
          %vm292 = vcmask 523264
          %293 = vst.msk [vmem:[#allocation2] sm:$0xff] %vm292, 0.0
          %294 = vst.msk [vmem:[#allocation3] sm:$0xff] %vm292, 0.0
          %295 = vst.msk [vmem:[#allocation4] sm:$0xff] %vm292, 0.0
          %296 = vst.msk [vmem:[#allocation5] sm:$0xff] %vm292, -inf
        $region44: #{lm_forward.4} parent=39 // pred_fallthru
          _
        %v297 = vld [vmem:[%s279] sm:$0xff]
        %v298 = vld [vmem:[%s283] sm:$0xff]
        %v299 = vld [vmem:[#allocation2] sm:$0xff]
        %v300 = vld [vmem:[#allocation3] sm:$0xff]
        %v301 = vld [vmem:[%s2] sm:$0xff]
        %v302 = vld [vmem:[%s2 + $0x8] sm:$0xff]
        %v303 = vld [vmem:[%s2 + $0x10] sm:$0xff]
        %v304 = vld [vmem:[%s2 + $0x18] sm:$0xff]
        %v305 = vld [vmem:[%s2 + $0x20] sm:$0xff]
        %v306 = vld [vmem:[%s2 + $0x28] sm:$0xff]
        %v307 = vld [vmem:[%s2 + $0x30] sm:$0xff]
        %v308 = vld [vmem:[%s2 + $0x38] sm:$0xff]
        %v309 = vld [vmem:[%s2 + $0x40] sm:$0xff]
        %v310 = vld [vmem:[%s2 + $0x48] sm:$0xff]
        %v311 = vld [vmem:[%s2 + $0x50] sm:$0xff]
        %v312 = vld [vmem:[%s2 + $0x58] sm:$0xff]
        %v313 = vld [vmem:[%s2 + $0x60] sm:$0xff]
        %v314 = vld [vmem:[%s2 + $0x68] sm:$0xff]
        %v315 = vld [vmem:[%s2 + $0x70] sm:$0xff]
        %v316 = vld [vmem:[%s2 + $0x78] sm:$0xff]
        %v317 = vld [vmem:[%s3] sm:$0xff]
        %v318 = vld [vmem:[%s3 + $0x8] sm:$0xff]
        %v319 = vld [vmem:[%s3 + $0x10] sm:$0xff]
        %v320 = vld [vmem:[%s3 + $0x18] sm:$0xff]
        %v321 = vld [vmem:[%s3 + $0x20] sm:$0xff]
        %v322 = vld [vmem:[%s3 + $0x28] sm:$0xff]
        %v323 = vld [vmem:[%s3 + $0x30] sm:$0xff]
        %v324 = vld [vmem:[%s3 + $0x38] sm:$0xff]
        %v325 = vld [vmem:[%s3 + $0x40] sm:$0xff]
        %v326 = vld [vmem:[%s3 + $0x48] sm:$0xff]
        %v327 = vld [vmem:[%s3 + $0x50] sm:$0xff]
        %v328 = vld [vmem:[%s3 + $0x58] sm:$0xff]
        %v329 = vld [vmem:[%s3 + $0x60] sm:$0xff]
        %v330 = vld [vmem:[%s3 + $0x68] sm:$0xff]
        %v331 = vld [vmem:[%s3 + $0x70] sm:$0xff]
        %v332 = vld [vmem:[%s3 + $0x78] sm:$0xff]
        %vm333 = vcmask 523264
        %v335 = vsel %vm333, %v299, 0
        %337 = vmatprep.subr.mxu0 %v318
        %338 = vmatpush1.msra.mxu0 %v317
        %339 = vmatprep.subr.mxu0 %v320
        %340 = vmatpush1.msra.mxu0 %v319
        %341 = vmatprep.subr.mxu0 %v322
        %342 = vmatpush1.msra.mxu0 %v321
        %343 = vmatprep.subr.mxu0 %v324
        %344 = vmatpush1.msra.mxu0 %v323
        %345 = vmatprep.subr.mxu0 %v326
        %346 = vmatpush1.msra.mxu0 %v325
        %347 = vmatprep.subr.mxu0 %v328
        %348 = vmatpush1.msra.mxu0 %v327
        %349 = vmatprep.subr.mxu0 %v330
        %350 = vmatpush1.msra.mxu0 %v329
        %351 = vmatprep.subr.mxu0 %v332
        %352 = vmatpush1.msra.mxu0 %v331
        %353 = vmatprep.subr.mxu0 0.0
        %354 = vmatpush1.msra.mxu0 0.0
        %355 = vmatprep.subr.mxu0 0.0
        %356 = vmatpush1.msra.mxu0 0.0
        %357 = vmatprep.subr.mxu0 0.0
        %358 = vmatpush1.msra.mxu0 0.0
        %359 = vmatprep.subr.mxu0 0.0
        %360 = vmatpush1.msra.mxu0 0.0
        %361 = vmatprep.subr.mxu0 0.0
        %362 = vmatpush1.msra.mxu0 0.0
        %363 = vmatprep.subr.mxu0 0.0
        %364 = vmatpush1.msra.mxu0 0.0
        %365 = vmatprep.subr.mxu0 0.0
        %366 = vmatpush1.msra.mxu0 0.0
        %367 = vmatprep.subr.mxu0 0.0
        %368 = vmatpush1.msra.mxu0 0.0
        %369 = vmatprep.subr.mxu0 0.0
        %370 = vmatpush1.msra.mxu0 0.0
        %371 = vmatprep.subr.mxu0 0.0
        %372 = vmatpush1.msra.mxu0 0.0
        %373 = vmatprep.subr.mxu0 0.0
        %374 = vmatpush1.msra.mxu0 0.0
        %375 = vmatprep.subr.mxu0 0.0
        %376 = vmatpush1.msra.mxu0 0.0
        %377 = vmatprep.subr.mxu0 0.0
        %378 = vmatpush1.msra.mxu0 0.0
        %379 = vmatprep.subr.mxu0 0.0
        %380 = vmatpush1.msra.mxu0 0.0
        %381 = vmatprep.subr.mxu0 0.0
        %382 = vmatpush1.msra.mxu0 0.0
        %383 = vmatprep.subr.mxu0 0.0
        %384 = vmatpush1.msra.mxu0 0.0
        %385 = vmatprep.subr.mxu0 0.0
        %386 = vmatpush1.msra.mxu0 0.0
        %387 = vmatprep.subr.mxu0 0.0
        %388 = vmatpush1.msra.mxu0 0.0
        %389 = vmatprep.subr.mxu0 0.0
        %390 = vmatpush1.msra.mxu0 0.0
        %391 = vmatprep.subr.mxu0 0.0
        %392 = vmatpush1.msra.mxu0 0.0
        %393 = vmatprep.subr.mxu0 0.0
        %394 = vmatpush1.msra.mxu0 0.0
        %395 = vmatprep.subr.mxu0 0.0
        %396 = vmatpush1.msra.mxu0 0.0
        %397 = vmatprep.subr.mxu0 0.0
        %398 = vmatpush1.msra.mxu0 0.0
        %399 = vmatprep.subr.mxu0 0.0
        %400 = vmatpush1.msra.mxu0 0.0
        %401 = vmatprep.mubr.f32.mxu0 0.0
        %402 = vmatmul.mubr.f32.gmra.mrb[0].mxu0 %v335
        %v403 = vpop.f32.mrb[0].mxu0
        %v404 = vadd.f32 0.0, %v403
        %v405 = vpop.f32.mrb[0].mxu0
        %v406 = vadd.f32 0.0, %v405
        %407 = vdwg.mxu0
        %v409 = vsel %vm333, %v297, 0
        %411 = vmatprep.subr.mxu0 %v302
        %412 = vmatpush1.msra.mxu0 %v301
        %413 = vmatprep.subr.mxu0 %v304
        %414 = vmatpush1.msra.mxu0 %v303
        %415 = vmatprep.subr.mxu0 %v306
        %416 = vmatpush1.msra.mxu0 %v305
        %417 = vmatprep.subr.mxu0 %v308
        %418 = vmatpush1.msra.mxu0 %v307
        %419 = vmatprep.subr.mxu0 %v310
        %420 = vmatpush1.msra.mxu0 %v309
        %421 = vmatprep.subr.mxu0 %v312
        %422 = vmatpush1.msra.mxu0 %v311
        %423 = vmatprep.subr.mxu0 %v314
        %424 = vmatpush1.msra.mxu0 %v313
        %425 = vmatprep.subr.mxu0 %v316
        %426 = vmatpush1.msra.mxu0 %v315
        %427 = vmatprep.subr.mxu0 0.0
        %428 = vmatpush1.msra.mxu0 0.0
        %429 = vmatprep.subr.mxu0 0.0
        %430 = vmatpush1.msra.mxu0 0.0
        %431 = vmatprep.subr.mxu0 0.0
        %432 = vmatpush1.msra.mxu0 0.0
        %433 = vmatprep.subr.mxu0 0.0
        %434 = vmatpush1.msra.mxu0 0.0
        %435 = vmatprep.subr.mxu0 0.0
        %436 = vmatpush1.msra.mxu0 0.0
        %437 = vmatprep.subr.mxu0 0.0
        %438 = vmatpush1.msra.mxu0 0.0
        %439 = vmatprep.subr.mxu0 0.0
        %440 = vmatpush1.msra.mxu0 0.0
        %441 = vmatprep.subr.mxu0 0.0
        %442 = vmatpush1.msra.mxu0 0.0
        %443 = vmatprep.subr.mxu0 0.0
        %444 = vmatpush1.msra.mxu0 0.0
        %445 = vmatprep.subr.mxu0 0.0
        %446 = vmatpush1.msra.mxu0 0.0
        %447 = vmatprep.subr.mxu0 0.0
        %448 = vmatpush1.msra.mxu0 0.0
        %449 = vmatprep.subr.mxu0 0.0
        %450 = vmatpush1.msra.mxu0 0.0
        %451 = vmatprep.subr.mxu0 0.0
        %452 = vmatpush1.msra.mxu0 0.0
        %453 = vmatprep.subr.mxu0 0.0
        %454 = vmatpush1.msra.mxu0 0.0
        %455 = vmatprep.subr.mxu0 0.0
        %456 = vmatpush1.msra.mxu0 0.0
        %457 = vmatprep.subr.mxu0 0.0
        %458 = vmatpush1.msra.mxu0 0.0
        %459 = vmatprep.subr.mxu0 0.0
        %460 = vmatpush1.msra.mxu0 0.0
        %461 = vmatprep.subr.mxu0 0.0
        %462 = vmatpush1.msra.mxu0 0.0
        %463 = vmatprep.subr.mxu0 0.0
        %464 = vmatpush1.msra.mxu0 0.0
        %465 = vmatprep.subr.mxu0 0.0
        %466 = vmatpush1.msra.mxu0 0.0
        %467 = vmatprep.subr.mxu0 0.0
        %468 = vmatpush1.msra.mxu0 0.0
        %469 = vmatprep.subr.mxu0 0.0
        %470 = vmatpush1.msra.mxu0 0.0
        %471 = vmatprep.subr.mxu0 0.0
        %472 = vmatpush1.msra.mxu0 0.0
        %473 = vmatprep.subr.mxu0 0.0
        %474 = vmatpush1.msra.mxu0 0.0
        %475 = vmatprep.mubr.f32.mxu0 0.0
        %476 = vmatmul.mubr.f32.gmra.mrb[0].mxu0 %v409
        %v477 = vpop.f32.mrb[0].mxu0
        %v478 = vadd.f32 %v404, %v477
        %v479 = vpop.f32.mrb[0].mxu0
        %v480 = vadd.f32 %v406, %v479
        %481 = vdwg.mxu0
        %v482 = vld [vmem:[%s4] sm:$0x3]
        %v484 = vlaneseq
        %v485 = vshrl.u32 %v484, 7
        %v486 = vsub.s32 0, %v485
        %v487 = vrot.slane %v482, %v486
        %v488 = vlaneseq
        %v489 = vshrl.u32 %v488, 7
        %v490 = vsub.s32 1, %v489
        %v491 = vrot.slane %v482, %v490
        %v494 = vadd.f32 %v478, %v487
        %v495 = vadd.f32 %v480, %v491
        %v496 = vxor.u32 %v494, 2147483648
        %v497 = vmul.f32 %v496, 1.442695
        %v498 = vpow.pop %v497
        %v499 = vadd.f32 %v498, 1.0
        %v500 = vrcp.pop %v499
        %v501 = vmul.f32 1.0, %v500
        %v502 = vtanh.pop %v495
        %v503 = vxor.u32 %v495, 2147483648
        %v504 = vmul.f32 %v503, 1.442695
        %v505 = vpow.pop %v504
        %v506 = vadd.f32 %v505, 1.0
        %v507 = vrcp.pop %v506
        %v508 = vmul.f32 1.0, %v507
        %510 = vrot.lane.b32.xlu0 %v300, 64
        %v511 = vpop.permute.xlu0 %510
        %v513 = vmul.f32 %v501, %v511
        %v514 = vmul.f32 %v501, %v502
        %516 = vrot.lane.b32.xlu0 %v514, 64
        %v517 = vpop.permute.xlu0 %516
        %v519 = vadd.f32 %v513, %v517
        %v520 = vtanh.pop %v519
        %v521 = vmul.f32 %v508, %v520
        %523 = vset.pattern.permute.xlu0 0
        %524 = vperm.xlu0 %523, %v298
        %v525 = vpop.permute.xlu0 %524
        %v527 = vmul.f32 %v525, %v519
        %v528 = vsub.f32 1.0, %v298
        %530 = vset.pattern.permute.xlu0 0
        %531 = vperm.xlu0 %530, %v528
        %v532 = vpop.permute.xlu0 %531
        %v534 = vmul.f32 %v532, %v300
        %536 = vrot.lane.b32.xlu0 %v534, 64
        %v537 = vpop.permute.xlu0 %536
        %v539 = vadd.f32 %v527, %v537
        %541 = vrot.lane.b32.xlu0 %v539, 64
        %v542 = vpop.permute.xlu0 %541
        %544 = vst.msk [vmem:[#allocation3] sm:$0xff] %vm333, %v542
        %v545 = vmul.f32 %v525, %v521
        %v546 = vmul.f32 %v532, %v299
        %548 = vrot.lane.b32.xlu0 %v546, 64
        %v549 = vpop.permute.xlu0 %548
        %v551 = vadd.f32 %v545, %v549
        %553 = vrot.lane.b32.xlu0 %v551, 64
        %v554 = vpop.permute.xlu0 %553
        %556 = vst.msk [vmem:[#allocation2] sm:$0xff] %vm333, %v554
        %558 = vrot.lane.b32.xlu0 %v545, 64
        %v559 = vpop.permute.xlu0 %558
        %561 = vst.msk [vmem:[%s287] sm:$0xff] %vm333, %v559
        %v562 = vld [vmem:[#allocation4] sm:$0xff]
        %v563 = vadd.f32 %v562, %v559
        %564 = vst.msk [vmem:[#allocation4] sm:$0xff] %vm333, %v563
        %v565 = vld [vmem:[#allocation5] sm:$0xff]
        %v566 = vmax.f32 %v565, %v559
        %567 = vst.msk [vmem:[#allocation5] sm:$0xff] %vm333, %v566
        %p568 = scmp.eq.s32.totalorder %s21, 7
        // Predicated region
        $region45: #{lm_forward.4} parent=39 // pred_check
          %p569 = pneg %p568
        $region46: #{lm_forward.4} parent=39 // pred_check_branch
          %571 = sbr.rel (%p569) target = $region48
        $region47: #{lm_forward.4} parent=39 // pred_region
          %v572 = vld [vmem:[#allocation2] sm:$0xff]
          %573 = vst.msk [vmem:[#allocation6] sm:$0xff] %vm333, %v572
          %v574 = vld [vmem:[#allocation2] sm:$0xff]
          %575 = vst.msk [vmem:[#allocation8] sm:$0xff] %vm333, %v574
          %v576 = vld [vmem:[#allocation4] sm:$0xff]
          %v577 = vmul.f32 %v576, 0.125
          %579 = vrot.lane.b32.xlu0 %v577, 64
          %v580 = vpop.permute.xlu0 %579
          %vm582 = vcmask 1048064
          %583 = vst.msk [vmem:[#allocation8] sm:$0xff] %vm582, %v580
          %v584 = vld [vmem:[#allocation5] sm:$0xff]
          %585 = vst.msk [vmem:[#allocation8 + $0x8] sm:$0xff] %vm333, %v584
        $region48: #{lm_forward.4} parent=39 // pred_fallthru
          _
        %p586 = scmp.lt.s32.totalorder %s21, 7
        %s587 = scalar_select %p586, %s21, 7
        %s588 = smul.addr %s587, 8
        %s589 = scalar_lea.vmem %s5, %s588
        // Predicated region
        $region49: #{lm_forward.4} parent=39 // pred_check
          %p590 = pneg %p154
        $region50: #{lm_forward.4} parent=39 // pred_check_branch
          %592 = sbr.rel (%p590) target = $region52
        $region51: #{lm_forward.4} parent=39 // pred_region
          _
        $region52: #{lm_forward.4} parent=39 // pred_fallthru
          _
        // Predicated region
        $region53: #{lm_forward.4} parent=39 // pred_check
          %p593 = pneg %p175
        $region54: #{lm_forward.4} parent=39 // pred_check_branch
          %595 = sbr.rel (%p593) target = $region56
        $region55: #{lm_forward.4} parent=39 // pred_region
          %s597 = ssub.s32 128, 128
          %598 = vsyncadd [#allocation7], %s597
          %s600 = sshll.u32 [#allocation6], 4
          %s601 = int_to_ptr.vmem [resolvable:$true] %s600
          %603 = dma.vmem_to_hbm [thread:$0]  %s601, 128, %s6, [#allocation7]
        $region56: #{lm_forward.4} parent=39 // pred_fallthru
          _
        // Predicated region
        $region57: #{lm_forward.4} parent=39 // pred_check
          %p604 = pneg %p196
        $region58: #{lm_forward.4} parent=39 // pred_check_branch
          %606 = sbr.rel (%p604) target = $region60
        $region59: #{lm_forward.4} parent=39 // pred_region
          %s608 = ssub.s32 256, 256
          %609 = vsyncadd [#allocation9], %s608
          %s611 = sshll.u32 [#allocation8], 4
          %s612 = int_to_ptr.vmem [resolvable:$true] %s611
          %614 = dma.vmem_to_hbm [thread:$0]  %s612, 256, %s7, [#allocation9]
        $region60: #{lm_forward.4} parent=39 // pred_fallthru
          _
        // Predicated region
        $region61: #{lm_forward.4} parent=39 // pred_check
          %p615 = pneg %p175
        $region62: #{lm_forward.4} parent=39 // pred_check_branch
          %617 = sbr.rel (%p615) target = $region64
        $region63: #{lm_forward.4} parent=39 // pred_region
          %618 = dma.done [#allocation7], 128
        $region64: #{lm_forward.4} parent=39 // pred_fallthru
          _
        // Predicated region
        $region65: #{lm_forward.4} parent=39 // pred_check
          %p619 = pneg %p196
        $region66: #{lm_forward.4} parent=39 // pred_check_branch
          %621 = sbr.rel (%p619) target = $region68
        $region67: #{lm_forward.4} parent=39 // pred_region
          %622 = dma.done [#allocation9], 256
        $region68: #{lm_forward.4} parent=39 // pred_fallthru
          _
      $region40: #{lm_forward.4} parent=5 // pred_fallthru
        _
      %p623 = scmp.le.s32.totalorder 2, %s16
      // Predicated region
      $region69: #{lm_forward.4} parent=5 // pred_check
        %p624 = pneg %p623
      $region70: #{lm_forward.4} parent=5 // pred_check_branch
        %626 = sbr.rel (%p624) target = $region72
      $region71: #{lm_forward.4} parent=5 // pred_region
        %s627 = ssub.s32 %s16, 2
        // Predicated region
        $region73: #{lm_forward.4} parent=71 // pred_check
          %p628 = pneg %p160
        $region74: #{lm_forward.4} parent=71 // pred_check_branch
          %630 = sbr.rel (%p628) target = $region76
        $region75: #{lm_forward.4} parent=71 // pred_region
          %p631 = scmp.lt.s32.totalorder %s22, 7
          %s632 = scalar_select %p631, %s22, 7
          %s633 = smul.addr %s632, 8
          %s634 = scalar_lea.vmem %s5, %s633
        $region76: #{lm_forward.4} parent=71 // pred_fallthru
          _
      $region72: #{lm_forward.4} parent=5 // pred_fallthru
        _
    $region6: #{lm_forward.4} parent=1 // loop_footer
      %s20 = sadd.s32 1, %s16
    $region7: #{lm_forward.4} parent=1 // loop_footer_branch
      %15 = sbr.rel target = $region3
    $region8: #{lm_forward.4} parent=1 // loop_exit
      _
    %635 = vsyncpa [#allocation7], 1
    %s636 = scalar_lea.sflag [#allocation7], 1
    %637 = vsyncpa %s636, 1
    %638 = vsyncpa [#allocation9], 1

// kernel: lm_forward.5
$region0: #{lm_forward.5}
  #allocation0 [shape = 'u32[]', space=smem, size = 0x4, offset = 0x4, fixed_abs, tag = 'smem constant byte address 0x4 - core index']
  #allocation1 [shape = 'u32[144,128]{1,0:T(1,128)}', space=vmem, size = 0x12000, scoped, tag = 'internal scratch']
  #allocation2 [shape = 'f32[8,64]{1,0:T(8,128)}', space=vmem, size = 0x1000, scoped, tag = 'scratch operand']
  #allocation3 [shape = 'f32[8,64]{1,0:T(8,128)}', space=vmem, size = 0x1000, scoped, tag = 'scratch operand']
  #allocation4 [shape = 'f32[8,64]{1,0:T(8,128)}', space=vmem, size = 0x1000, scoped, tag = 'scratch operand']
  #allocation5 [shape = 'f32[8,64]{1,0:T(8,128)}', space=vmem, size = 0x1000, scoped, tag = 'scratch operand']
  %s0 = inlined_call_operand.vmem [shape: f32[8,8,64], index: 0, kind: input, shape index: {}]
  %s1 = inlined_call_operand.vmem [shape: f32[8,8,1], index: 1, kind: input, shape index: {}]
  %s2 = inlined_call_operand.vmem [shape: f32[64,256], index: 2, kind: input, shape index: {}]
  %s3 = inlined_call_operand.vmem [shape: f32[64,256], index: 3, kind: input, shape index: {}]
  %s4 = inlined_call_operand.vmem [shape: f32[1,256], index: 4, kind: input, shape index: {}]
  %s5 = inlined_call_operand.hbm [shape: f32[8,8,64], index: 5, kind: output, shape index: {0}]
  %s6 = inlined_call_operand.hbm [shape: f32[8,64], index: 6, kind: output, shape index: {1}]
  %s7 = inlined_call_operand.hbm [shape: f32[8,192], index: 7, kind: output, shape index: {2}]
  %8 = xla_tuple %s5, %s6, %s7
  %s9 = sld [smem:[#allocation0]]
  $region77: #{lm_forward.5} parent=0
    _
  %s11 = ssub.s32 1, %s9
  %s12 = scalar_select 0, %s11, %s9
  $region1: #{lm_forward.5} parent=0
    #allocation6 [shape = 'u8[8192]{0}', space=vmem, size = 0x2000, scoped, tag = 'output window, operand 0']
    #allocation7 [shape = 's32[2]{0}', space=sflag, size = 0x8, scoped, tag = 'scoped memory for lm_forward.5']
    #allocation8 [shape = 'u8[4096]{0}', space=vmem, size = 0x1000, scoped, tag = 'output window, operand 1, single buffered']
    #allocation9 [shape = 's32[1]{0}', space=sflag, size = 0x4, scoped, tag = 'scoped memory for lm_forward.5']
    #allocation10 [shape = 'u8[8192]{0}', space=vmem, size = 0x2000, scoped, tag = 'output window, operand 2, single buffered']
    %13 = vsyncpa [#allocation7], 0
    %s14 = scalar_lea.sflag [#allocation7], 1
    %15 = vsyncpa %s14, 0
    %16 = vsyncpa [#allocation9], 0
    loop: start=0, step=1, limit=10
    $region2: #{lm_forward.5} parent=1 // loop_pre_header
      _
    $region3: #{lm_forward.5} parent=1 // loop_header
      %s18 = sphi 0, %s22
      %p19 = scmp.ge.s32.totalorder %s18, 10
      %s28 = sphi 0, %s30
      %s31 = sphi 0, %s28
      %s32 = sphi 0, %s31
      %s48 = sphi 0, %s32
      %s54 = sphi 0, %s56
      %s57 = sphi 0, %s54
      %s58 = sphi 0, %s57
      %s74 = sphi 0, %s58
      %s78 = sphi 0, %s78
      %s80 = sphi 0, %s78
      %s81 = sphi 0, %s80
      %s95 = sphi 0, %s81
      %s99 = sphi 0, %s99
      %s101 = sphi 0, %s99
      %s102 = sphi 0, %s101
      %s116 = sphi 0, %s102
      %s120 = sphi 0, %s120
      %s122 = sphi 0, %s120
      %s123 = sphi 0, %s122
      %s137 = sphi 0, %s123
      %s143 = sphi 0, %s145
      %s146 = sphi 0, %s143
      %s147 = sphi 0, %s146
      %s163 = sphi 0, %s147
      %s167 = sphi 0, %s167
      %s169 = sphi 0, %s167
      %s170 = sphi 0, %s169
      %s184 = sphi 0, %s170
      %s188 = sphi 0, %s188
      %s190 = sphi 0, %s188
      %s191 = sphi 0, %s190
      %s205 = sphi 0, %s191
    $region4: #{lm_forward.5} parent=1 // loop_header_branch
      %21 = sbr.rel (%p19) target = $region8
    $region5: #{lm_forward.5} parent=1 // loop_body
      %s23 = ssub.s32 %s18, 1
      %s24 = ssub.s32 %s18, 2
      %s25 = sadd.s32 %s18, 1
      %s26 = ssub.s32 %s18, %s25
      %p27 = scmp.eq.s32.totalorder %s26, 0
      %s29 = sadd.s32 %s28, 1
      %s30 = scalar_select %p27, %s28, %s29
      %p33 = pneg %p27
      %p34 = scmp.eq.s32.totalorder %s18, 7
      %p35 = por %p33, %p34
      %p36 = scmp.ne.s32.totalorder %s28, %s31
      %p37 = scmp.eq.s32.totalorder %s18, 0
      %p38 = por %p36, %p37
      %p39 = scmp.ne.s32.totalorder %s28, %s31
      %p40 = scmp.eq.s32.totalorder %s23, 7
      %p41 = por %p39, %p40
      %p42 = scmp.ne.s32.totalorder %s31, %s32
      %p43 = scmp.eq.s32.totalorder %s23, 0
      %p44 = por %p42, %p43
      %p45 = scmp.ne.s32.totalorder %s31, %s32
      %p46 = scmp.eq.s32.totalorder %s24, 7
      %p47 = por %p45, %p46
      %p49 = scmp.ne.s32.totalorder %s32, %s48
      %p50 = scmp.eq.s32.totalorder %s24, 0
      %p51 = por %p49, %p50
      %s52 = ssub.s32 %s18, %s25
      %p53 = scmp.eq.s32.totalorder %s52, 0
      %s55 = sadd.s32 %s54, 1
      %s56 = scalar_select %p53, %s54, %s55
      %p59 = pneg %p53
      %p60 = scmp.eq.s32.totalorder %s18, 7
      %p61 = por %p59, %p60
      %p62 = scmp.ne.s32.totalorder %s54, %s57
      %p63 = scmp.eq.s32.totalorder %s18, 0
      %p64 = por %p62, %p63
      %p65 = scmp.ne.s32.totalorder %s54, %s57
      %p66 = scmp.eq.s32.totalorder %s23, 7
      %p67 = por %p65, %p66
      %p68 = scmp.ne.s32.totalorder %s57, %s58
      %p69 = scmp.eq.s32.totalorder %s23, 0
      %p70 = por %p68, %p69
      %p71 = scmp.ne.s32.totalorder %s57, %s58
      %p72 = scmp.eq.s32.totalorder %s24, 7
      %p73 = por %p71, %p72
      %p75 = scmp.ne.s32.totalorder %s58, %s74
      %p76 = scmp.eq.s32.totalorder %s24, 0
      %p77 = por %p75, %p76
      %s79 = sadd.s32 %s78, 1
      %p82 = scmp.eq.s32.totalorder %s18, 7
      %p83 = scmp.ne.s32.totalorder %s78, %s80
      %p84 = scmp.eq.s32.totalorder %s18, 0
      %p85 = por %p83, %p84
      %p86 = scmp.ne.s32.totalorder %s78, %s80
      %p87 = scmp.eq.s32.totalorder %s23, 7
      %p88 = por %p86, %p87
      %p89 = scmp.ne.s32.totalorder %s80, %s81
      %p90 = scmp.eq.s32.totalorder %s23, 0
      %p91 = por %p89, %p90
      %p92 = scmp.ne.s32.totalorder %s80, %s81
      %p93 = scmp.eq.s32.totalorder %s24, 7
      %p94 = por %p92, %p93
      %p96 = scmp.ne.s32.totalorder %s81, %s95
      %p97 = scmp.eq.s32.totalorder %s24, 0
      %p98 = por %p96, %p97
      %s100 = sadd.s32 %s99, 1
      %p103 = scmp.eq.s32.totalorder %s18, 7
      %p104 = scmp.ne.s32.totalorder %s99, %s101
      %p105 = scmp.eq.s32.totalorder %s18, 0
      %p106 = por %p104, %p105
      %p107 = scmp.ne.s32.totalorder %s99, %s101
      %p108 = scmp.eq.s32.totalorder %s23, 7
      %p109 = por %p107, %p108
      %p110 = scmp.ne.s32.totalorder %s101, %s102
      %p111 = scmp.eq.s32.totalorder %s23, 0
      %p112 = por %p110, %p111
      %p113 = scmp.ne.s32.totalorder %s101, %s102
      %p114 = scmp.eq.s32.totalorder %s24, 7
      %p115 = por %p113, %p114
      %p117 = scmp.ne.s32.totalorder %s102, %s116
      %p118 = scmp.eq.s32.totalorder %s24, 0
      %p119 = por %p117, %p118
      %s121 = sadd.s32 %s120, 1
      %p124 = scmp.eq.s32.totalorder %s18, 7
      %p125 = scmp.ne.s32.totalorder %s120, %s122
      %p126 = scmp.eq.s32.totalorder %s18, 0
      %p127 = por %p125, %p126
      %p128 = scmp.ne.s32.totalorder %s120, %s122
      %p129 = scmp.eq.s32.totalorder %s23, 7
      %p130 = por %p128, %p129
      %p131 = scmp.ne.s32.totalorder %s122, %s123
      %p132 = scmp.eq.s32.totalorder %s23, 0
      %p133 = por %p131, %p132
      %p134 = scmp.ne.s32.totalorder %s122, %s123
      %p135 = scmp.eq.s32.totalorder %s24, 7
      %p136 = por %p134, %p135
      %p138 = scmp.ne.s32.totalorder %s123, %s137
      %p139 = scmp.eq.s32.totalorder %s24, 0
      %p140 = por %p138, %p139
      %s141 = ssub.s32 %s18, %s25
      %p142 = scmp.eq.s32.totalorder %s141, 0
      %s144 = sadd.s32 %s143, 1
      %s145 = scalar_select %p142, %s143, %s144
      %p148 = pneg %p142
      %p149 = scmp.eq.s32.totalorder %s18, 7
      %p150 = por %p148, %p149
      %p151 = scmp.ne.s32.totalorder %s143, %s146
      %p152 = scmp.eq.s32.totalorder %s18, 0
      %p153 = por %p151, %p152
      %p154 = scmp.ne.s32.totalorder %s143, %s146
      %p155 = scmp.eq.s32.totalorder %s23, 7
      %p156 = por %p154, %p155
      %p157 = scmp.ne.s32.totalorder %s146, %s147
      %p158 = scmp.eq.s32.totalorder %s23, 0
      %p159 = por %p157, %p158
      %p160 = scmp.ne.s32.totalorder %s146, %s147
      %p161 = scmp.eq.s32.totalorder %s24, 7
      %p162 = por %p160, %p161
      %p164 = scmp.ne.s32.totalorder %s147, %s163
      %p165 = scmp.eq.s32.totalorder %s24, 0
      %p166 = por %p164, %p165
      %s168 = sadd.s32 %s167, 1
      %p171 = scmp.eq.s32.totalorder %s18, 7
      %p172 = scmp.ne.s32.totalorder %s167, %s169
      %p173 = scmp.eq.s32.totalorder %s18, 0
      %p174 = por %p172, %p173
      %p175 = scmp.ne.s32.totalorder %s167, %s169
      %p176 = scmp.eq.s32.totalorder %s23, 7
      %p177 = por %p175, %p176
      %p178 = scmp.ne.s32.totalorder %s169, %s170
      %p179 = scmp.eq.s32.totalorder %s23, 0
      %p180 = por %p178, %p179
      %p181 = scmp.ne.s32.totalorder %s169, %s170
      %p182 = scmp.eq.s32.totalorder %s24, 7
      %p183 = por %p181, %p182
      %p185 = scmp.ne.s32.totalorder %s170, %s184
      %p186 = scmp.eq.s32.totalorder %s24, 0
      %p187 = por %p185, %p186
      %s189 = sadd.s32 %s188, 1
      %p192 = scmp.eq.s32.totalorder %s18, 7
      %p193 = scmp.ne.s32.totalorder %s188, %s190
      %p194 = scmp.eq.s32.totalorder %s18, 0
      %p195 = por %p193, %p194
      %p196 = scmp.ne.s32.totalorder %s188, %s190
      %p197 = scmp.eq.s32.totalorder %s23, 7
      %p198 = por %p196, %p197
      %p199 = scmp.ne.s32.totalorder %s190, %s191
      %p200 = scmp.eq.s32.totalorder %s23, 0
      %p201 = por %p199, %p200
      %p202 = scmp.ne.s32.totalorder %s190, %s191
      %p203 = scmp.eq.s32.totalorder %s24, 7
      %p204 = por %p202, %p203
      %p206 = scmp.ne.s32.totalorder %s191, %s205
      %p207 = scmp.eq.s32.totalorder %s24, 0
      %p208 = por %p206, %p207
      %p209 = scmp.le.s32.totalorder 1, %s18
      %p210 = scmp.lt.s32.totalorder %s18, 9
      %p211 = pnand %p209, %p210
      %p212 = pneg %p211
      // Predicated region
      $region9: #{lm_forward.5} parent=5 // pred_check
        _
      $region10: #{lm_forward.5} parent=5 // pred_check_branch
        %214 = sbr.rel (%p211) target = $region12
      $region11: #{lm_forward.5} parent=5 // pred_region
        %s215 = ssub.s32 %s18, 1
        // Predicated region
        $region13: #{lm_forward.5} parent=11 // pred_check
          %p216 = pneg %p91
        $region14: #{lm_forward.5} parent=11 // pred_check_branch
          %218 = sbr.rel (%p216) target = $region16
        $region15: #{lm_forward.5} parent=11 // pred_region
          _
        $region16: #{lm_forward.5} parent=11 // pred_fallthru
          _
        // Predicated region
        $region17: #{lm_forward.5} parent=11 // pred_check
          %p219 = pneg %p112
        $region18: #{lm_forward.5} parent=11 // pred_check_branch
          %221 = sbr.rel (%p219) target = $region20
        $region19: #{lm_forward.5} parent=11 // pred_region
          _
        $region20: #{lm_forward.5} parent=11 // pred_fallthru
          _
        // Predicated region
        $region21: #{lm_forward.5} parent=11 // pred_check
          %p222 = pneg %p133
        $region22: #{lm_forward.5} parent=11 // pred_check_branch
          %224 = sbr.rel (%p222) target = $region24
        $region23: #{lm_forward.5} parent=11 // pred_region
          _
        $region24: #{lm_forward.5} parent=11 // pred_fallthru
          _
      $region12: #{lm_forward.5} parent=5 // pred_fallthru
        _
      %p225 = scmp.lt.s32.totalorder %s18, 8
      // Predicated region
      $region25: #{lm_forward.5} parent=5 // pred_check
        %p226 = pneg %p225
      $region26: #{lm_forward.5} parent=5 // pred_check_branch
        %228 = sbr.rel (%p226) target = $region28
      $region27: #{lm_forward.5} parent=5 // pred_region
        // Predicated region
        $region29: #{lm_forward.5} parent=27 // pred_check
          %p229 = pneg %p38
        $region30: #{lm_forward.5} parent=27 // pred_check_branch
          %231 = sbr.rel (%p229) target = $region32
        $region31: #{lm_forward.5} parent=27 // pred_region
          %p232 = scmp.lt.s32.totalorder %s18, 7
          %s233 = scalar_select %p232, %s18, 7
          %s234 = smul.addr %s233, 8
          %s235 = scalar_lea.vmem %s0, %s234
        $region32: #{lm_forward.5} parent=27 // pred_fallthru
          _
        // Predicated region
        $region33: #{lm_forward.5} parent=27 // pred_check
          %p236 = pneg %p64
        $region34: #{lm_forward.5} parent=27 // pred_check_branch
          %238 = sbr.rel (%p236) target = $region36
        $region35: #{lm_forward.5} parent=27 // pred_region
          %p239 = scmp.lt.s32.totalorder %s18, 7
          %s240 = scalar_select %p239, %s18, 7
          %s241 = smul.addr %s240, 8
          %s242 = scalar_lea.vmem %s1, %s241
        $region36: #{lm_forward.5} parent=27 // pred_fallthru
          _
      $region28: #{lm_forward.5} parent=5 // pred_fallthru
        _
      %p243 = scmp.le.s32.totalorder 1, %s18
      %p244 = scmp.lt.s32.totalorder %s18, 9
      %p245 = pnand %p243, %p244
      %p246 = pneg %p245
      // Predicated region
      $region37: #{lm_forward.5} parent=5 // pred_check
        _
      $region38: #{lm_forward.5} parent=5 // pred_check_branch
        %248 = sbr.rel (%p245) target = $region40
      $region39: #{lm_forward.5} parent=5 // pred_region
        %s249 = ssub.s32 %s18, 1
        %p250 = scmp.lt.s32.totalorder %s23, 7
        %s251 = scalar_select %p250, %s23, 7
        %s252 = smul.addr %s251, 8
        %s253 = scalar_lea.vmem %s0, %s252
        %p254 = pneg %p44
        %p255 = pneg %p41
        %p256 = scmp.lt.s32.totalorder %s23, 7
        %s257 = scalar_select %p256, %s23, 7
        %s258 = smul.addr %s257, 8
        %s259 = scalar_lea.vmem %s1, %s258
        %p260 = pneg %p70
        %p261 = pneg %p67
        %p262 = pneg %p91
        %p263 = pneg %p88
        %p264 = pneg %p112
        %p265 = pneg %p109
        %p266 = pneg %p133
        %p267 = pneg %p130
        %p268 = pneg %p159
        %p269 = pneg %p156
        %s270 = sand.u32 %s146, 1
        %s271 = scalar_lea.sflag [#allocation7], %s270
        %s272 = sand.u32 %s146, 1
        %s273 = smul.addr %s272, 8
        %s274 = scalar_lea.vmem [#allocation6], %s273
        %p275 = pneg %p180
        %p276 = pneg %p177
        %p277 = pneg %p201
        %p278 = pneg %p198
        %p279 = scmp.lt.s32.totalorder %s23, 7
        %s280 = scalar_select %p279, %s23, 7
        %s281 = smul.addr %s280, 8
        %s282 = scalar_lea.vmem %s0, %s281
        %p283 = scmp.lt.s32.totalorder %s23, 7
        %s284 = scalar_select %p283, %s23, 7
        %s285 = smul.addr %s284, 8
        %s286 = scalar_lea.vmem %s1, %s285
        %p287 = scmp.eq.s32.totalorder %s23, 0
        // Predicated region
        $region41: #{lm_forward.5} parent=39 // pred_check
          %p288 = pneg %p287
        $region42: #{lm_forward.5} parent=39 // pred_check_branch
          %290 = sbr.rel (%p288) target = $region44
        $region43: #{lm_forward.5} parent=39 // pred_region
          %vm291 = vcmask 523264
          %292 = vst.msk [vmem:[#allocation2] sm:$0xff] %vm291, 0.0
          %293 = vst.msk [vmem:[#allocation3] sm:$0xff] %vm291, 0.0
          %294 = vst.msk [vmem:[#allocation4] sm:$0xff] %vm291, 0.0
          %295 = vst.msk [vmem:[#allocation5] sm:$0xff] %vm291, -inf
        $region44: #{lm_forward.5} parent=39 // pred_fallthru
          _
        %v296 = vld [vmem:[%s282] sm:$0xff]
        %v297 = vld [vmem:[%s286] sm:$0xff]
        %v298 = vld [vmem:[#allocation2] sm:$0xff]
        %v299 = vld [vmem:[#allocation3] sm:$0xff]
        %v300 = vld [vmem:[%s2] sm:$0xff]
        %v301 = vld [vmem:[%s2 + $0x8] sm:$0xff]
        %v302 = vld [vmem:[%s2 + $0x10] sm:$0xff]
        %v303 = vld [vmem:[%s2 + $0x18] sm:$0xff]
        %v304 = vld [vmem:[%s2 + $0x20] sm:$0xff]
        %v305 = vld [vmem:[%s2 + $0x28] sm:$0xff]
        %v306 = vld [vmem:[%s2 + $0x30] sm:$0xff]
        %v307 = vld [vmem:[%s2 + $0x38] sm:$0xff]
        %v308 = vld [vmem:[%s2 + $0x40] sm:$0xff]
        %v309 = vld [vmem:[%s2 + $0x48] sm:$0xff]
        %v310 = vld [vmem:[%s2 + $0x50] sm:$0xff]
        %v311 = vld [vmem:[%s2 + $0x58] sm:$0xff]
        %v312 = vld [vmem:[%s2 + $0x60] sm:$0xff]
        %v313 = vld [vmem:[%s2 + $0x68] sm:$0xff]
        %v314 = vld [vmem:[%s2 + $0x70] sm:$0xff]
        %v315 = vld [vmem:[%s2 + $0x78] sm:$0xff]
        %v316 = vld [vmem:[%s3] sm:$0xff]
        %v317 = vld [vmem:[%s3 + $0x8] sm:$0xff]
        %v318 = vld [vmem:[%s3 + $0x10] sm:$0xff]
        %v319 = vld [vmem:[%s3 + $0x18] sm:$0xff]
        %v320 = vld [vmem:[%s3 + $0x20] sm:$0xff]
        %v321 = vld [vmem:[%s3 + $0x28] sm:$0xff]
        %v322 = vld [vmem:[%s3 + $0x30] sm:$0xff]
        %v323 = vld [vmem:[%s3 + $0x38] sm:$0xff]
        %v324 = vld [vmem:[%s3 + $0x40] sm:$0xff]
        %v325 = vld [vmem:[%s3 + $0x48] sm:$0xff]
        %v326 = vld [vmem:[%s3 + $0x50] sm:$0xff]
        %v327 = vld [vmem:[%s3 + $0x58] sm:$0xff]
        %v328 = vld [vmem:[%s3 + $0x60] sm:$0xff]
        %v329 = vld [vmem:[%s3 + $0x68] sm:$0xff]
        %v330 = vld [vmem:[%s3 + $0x70] sm:$0xff]
        %v331 = vld [vmem:[%s3 + $0x78] sm:$0xff]
        %vm332 = vcmask 523264
        %v334 = vsel %vm332, %v298, 0
        %336 = vmatprep.subr.mxu0 %v317
        %337 = vmatpush1.msra.mxu0 %v316
        %338 = vmatprep.subr.mxu0 %v319
        %339 = vmatpush1.msra.mxu0 %v318
        %340 = vmatprep.subr.mxu0 %v321
        %341 = vmatpush1.msra.mxu0 %v320
        %342 = vmatprep.subr.mxu0 %v323
        %343 = vmatpush1.msra.mxu0 %v322
        %344 = vmatprep.subr.mxu0 %v325
        %345 = vmatpush1.msra.mxu0 %v324
        %346 = vmatprep.subr.mxu0 %v327
        %347 = vmatpush1.msra.mxu0 %v326
        %348 = vmatprep.subr.mxu0 %v329
        %349 = vmatpush1.msra.mxu0 %v328
        %350 = vmatprep.subr.mxu0 %v331
        %351 = vmatpush1.msra.mxu0 %v330
        %352 = vmatprep.subr.mxu0 0.0
        %353 = vmatpush1.msra.mxu0 0.0
        %354 = vmatprep.subr.mxu0 0.0
        %355 = vmatpush1.msra.mxu0 0.0
        %356 = vmatprep.subr.mxu0 0.0
        %357 = vmatpush1.msra.mxu0 0.0
        %358 = vmatprep.subr.mxu0 0.0
        %359 = vmatpush1.msra.mxu0 0.0
        %360 = vmatprep.subr.mxu0 0.0
        %361 = vmatpush1.msra.mxu0 0.0
        %362 = vmatprep.subr.mxu0 0.0
        %363 = vmatpush1.msra.mxu0 0.0
        %364 = vmatprep.subr.mxu0 0.0
        %365 = vmatpush1.msra.mxu0 0.0
        %366 = vmatprep.subr.mxu0 0.0
        %367 = vmatpush1.msra.mxu0 0.0
        %368 = vmatprep.subr.mxu0 0.0
        %369 = vmatpush1.msra.mxu0 0.0
        %370 = vmatprep.subr.mxu0 0.0
        %371 = vmatpush1.msra.mxu0 0.0
        %372 = vmatprep.subr.mxu0 0.0
        %373 = vmatpush1.msra.mxu0 0.0
        %374 = vmatprep.subr.mxu0 0.0
        %375 = vmatpush1.msra.mxu0 0.0
        %376 = vmatprep.subr.mxu0 0.0
        %377 = vmatpush1.msra.mxu0 0.0
        %378 = vmatprep.subr.mxu0 0.0
        %379 = vmatpush1.msra.mxu0 0.0
        %380 = vmatprep.subr.mxu0 0.0
        %381 = vmatpush1.msra.mxu0 0.0
        %382 = vmatprep.subr.mxu0 0.0
        %383 = vmatpush1.msra.mxu0 0.0
        %384 = vmatprep.subr.mxu0 0.0
        %385 = vmatpush1.msra.mxu0 0.0
        %386 = vmatprep.subr.mxu0 0.0
        %387 = vmatpush1.msra.mxu0 0.0
        %388 = vmatprep.subr.mxu0 0.0
        %389 = vmatpush1.msra.mxu0 0.0
        %390 = vmatprep.subr.mxu0 0.0
        %391 = vmatpush1.msra.mxu0 0.0
        %392 = vmatprep.subr.mxu0 0.0
        %393 = vmatpush1.msra.mxu0 0.0
        %394 = vmatprep.subr.mxu0 0.0
        %395 = vmatpush1.msra.mxu0 0.0
        %396 = vmatprep.subr.mxu0 0.0
        %397 = vmatpush1.msra.mxu0 0.0
        %398 = vmatprep.subr.mxu0 0.0
        %399 = vmatpush1.msra.mxu0 0.0
        %400 = vmatprep.mubr.f32.mxu0 0.0
        %401 = vmatmul.mubr.f32.gmra.mrb[0].mxu0 %v334
        %v402 = vpop.f32.mrb[0].mxu0
        %v403 = vadd.f32 0.0, %v402
        %v404 = vpop.f32.mrb[0].mxu0
        %v405 = vadd.f32 0.0, %v404
        %406 = vdwg.mxu0
        %v408 = vsel %vm332, %v296, 0
        %410 = vmatprep.subr.mxu0 %v301
        %411 = vmatpush1.msra.mxu0 %v300
        %412 = vmatprep.subr.mxu0 %v303
        %413 = vmatpush1.msra.mxu0 %v302
        %414 = vmatprep.subr.mxu0 %v305
        %415 = vmatpush1.msra.mxu0 %v304
        %416 = vmatprep.subr.mxu0 %v307
        %417 = vmatpush1.msra.mxu0 %v306
        %418 = vmatprep.subr.mxu0 %v309
        %419 = vmatpush1.msra.mxu0 %v308
        %420 = vmatprep.subr.mxu0 %v311
        %421 = vmatpush1.msra.mxu0 %v310
        %422 = vmatprep.subr.mxu0 %v313
        %423 = vmatpush1.msra.mxu0 %v312
        %424 = vmatprep.subr.mxu0 %v315
        %425 = vmatpush1.msra.mxu0 %v314
        %426 = vmatprep.subr.mxu0 0.0
        %427 = vmatpush1.msra.mxu0 0.0
        %428 = vmatprep.subr.mxu0 0.0
        %429 = vmatpush1.msra.mxu0 0.0
        %430 = vmatprep.subr.mxu0 0.0
        %431 = vmatpush1.msra.mxu0 0.0
        %432 = vmatprep.subr.mxu0 0.0
        %433 = vmatpush1.msra.mxu0 0.0
        %434 = vmatprep.subr.mxu0 0.0
        %435 = vmatpush1.msra.mxu0 0.0
        %436 = vmatprep.subr.mxu0 0.0
        %437 = vmatpush1.msra.mxu0 0.0
        %438 = vmatprep.subr.mxu0 0.0
        %439 = vmatpush1.msra.mxu0 0.0
        %440 = vmatprep.subr.mxu0 0.0
        %441 = vmatpush1.msra.mxu0 0.0
        %442 = vmatprep.subr.mxu0 0.0
        %443 = vmatpush1.msra.mxu0 0.0
        %444 = vmatprep.subr.mxu0 0.0
        %445 = vmatpush1.msra.mxu0 0.0
        %446 = vmatprep.subr.mxu0 0.0
        %447 = vmatpush1.msra.mxu0 0.0
        %448 = vmatprep.subr.mxu0 0.0
        %449 = vmatpush1.msra.mxu0 0.0
        %450 = vmatprep.subr.mxu0 0.0
        %451 = vmatpush1.msra.mxu0 0.0
        %452 = vmatprep.subr.mxu0 0.0
        %453 = vmatpush1.msra.mxu0 0.0
        %454 = vmatprep.subr.mxu0 0.0
        %455 = vmatpush1.msra.mxu0 0.0
        %456 = vmatprep.subr.mxu0 0.0
        %457 = vmatpush1.msra.mxu0 0.0
        %458 = vmatprep.subr.mxu0 0.0
        %459 = vmatpush1.msra.mxu0 0.0
        %460 = vmatprep.subr.mxu0 0.0
        %461 = vmatpush1.msra.mxu0 0.0
        %462 = vmatprep.subr.mxu0 0.0
        %463 = vmatpush1.msra.mxu0 0.0
        %464 = vmatprep.subr.mxu0 0.0
        %465 = vmatpush1.msra.mxu0 0.0
        %466 = vmatprep.subr.mxu0 0.0
        %467 = vmatpush1.msra.mxu0 0.0
        %468 = vmatprep.subr.mxu0 0.0
        %469 = vmatpush1.msra.mxu0 0.0
        %470 = vmatprep.subr.mxu0 0.0
        %471 = vmatpush1.msra.mxu0 0.0
        %472 = vmatprep.subr.mxu0 0.0
        %473 = vmatpush1.msra.mxu0 0.0
        %474 = vmatprep.mubr.f32.mxu0 0.0
        %475 = vmatmul.mubr.f32.gmra.mrb[0].mxu0 %v408
        %v476 = vpop.f32.mrb[0].mxu0
        %v477 = vadd.f32 %v403, %v476
        %v478 = vpop.f32.mrb[0].mxu0
        %v479 = vadd.f32 %v405, %v478
        %480 = vdwg.mxu0
        %v481 = vld [vmem:[%s4] sm:$0x3]
        %v483 = vlaneseq
        %v484 = vshrl.u32 %v483, 7
        %v485 = vsub.s32 0, %v484
        %v486 = vrot.slane %v481, %v485
        %v487 = vlaneseq
        %v488 = vshrl.u32 %v487, 7
        %v489 = vsub.s32 1, %v488
        %v490 = vrot.slane %v481, %v489
        %v493 = vadd.f32 %v477, %v486
        %v494 = vadd.f32 %v479, %v490
        %v495 = vxor.u32 %v493, 2147483648
        %v496 = vmul.f32 %v495, 1.442695
        %v497 = vpow.pop %v496
        %v498 = vadd.f32 %v497, 1.0
        %v499 = vrcp.pop %v498
        %v500 = vmul.f32 1.0, %v499
        %v501 = vtanh.pop %v494
        %v502 = vxor.u32 %v494, 2147483648
        %v503 = vmul.f32 %v502, 1.442695
        %v504 = vpow.pop %v503
        %v505 = vadd.f32 %v504, 1.0
        %v506 = vrcp.pop %v505
        %v507 = vmul.f32 1.0, %v506
        %509 = vrot.lane.b32.xlu0 %v299, 64
        %v510 = vpop.permute.xlu0 %509
        %v512 = vmul.f32 %v500, %v510
        %v513 = vmul.f32 %v500, %v501
        %515 = vrot.lane.b32.xlu0 %v513, 64
        %v516 = vpop.permute.xlu0 %515
        %v518 = vadd.f32 %v512, %v516
        %v519 = vtanh.pop %v518
        %v520 = vmul.f32 %v507, %v519
        %522 = vset.pattern.permute.xlu0 0
        %523 = vperm.xlu0 %522, %v297
        %v524 = vpop.permute.xlu0 %523
        %v526 = vmul.f32 %v524, %v518
        %v527 = vsub.f32 1.0, %v297
        %529 = vset.pattern.permute.xlu0 0
        %530 = vperm.xlu0 %529, %v527
        %v531 = vpop.permute.xlu0 %530
        %v533 = vmul.f32 %v531, %v299
        %535 = vrot.lane.b32.xlu0 %v533, 64
        %v536 = vpop.permute.xlu0 %535
        %v538 = vadd.f32 %v526, %v536
        %540 = vrot.lane.b32.xlu0 %v538, 64
        %v541 = vpop.permute.xlu0 %540
        %543 = vst.msk [vmem:[#allocation3] sm:$0xff] %vm332, %v541
        %v544 = vmul.f32 %v524, %v520
        %v545 = vmul.f32 %v531, %v298
        %547 = vrot.lane.b32.xlu0 %v545, 64
        %v548 = vpop.permute.xlu0 %547
        %v550 = vadd.f32 %v544, %v548
        %552 = vrot.lane.b32.xlu0 %v550, 64
        %v553 = vpop.permute.xlu0 %552
        %555 = vst.msk [vmem:[#allocation2] sm:$0xff] %vm332, %v553
        %557 = vrot.lane.b32.xlu0 %v544, 64
        %v558 = vpop.permute.xlu0 %557
        %560 = vst.msk [vmem:[%s274] sm:$0xff] %vm332, %v558
        %v561 = vld [vmem:[#allocation4] sm:$0xff]
        %v562 = vadd.f32 %v561, %v558
        %563 = vst.msk [vmem:[#allocation4] sm:$0xff] %vm332, %v562
        %v564 = vld [vmem:[#allocation5] sm:$0xff]
        %v565 = vmax.f32 %v564, %v558
        %566 = vst.msk [vmem:[#allocation5] sm:$0xff] %vm332, %v565
        %p567 = scmp.eq.s32.totalorder %s23, 7
        // Predicated region
        $region45: #{lm_forward.5} parent=39 // pred_check
          %p568 = pneg %p567
        $region46: #{lm_forward.5} parent=39 // pred_check_branch
          %570 = sbr.rel (%p568) target = $region48
        $region47: #{lm_forward.5} parent=39 // pred_region
          %v571 = vld [vmem:[#allocation2] sm:$0xff]
          %572 = vst.msk [vmem:[#allocation8] sm:$0xff] %vm332, %v571
          %v573 = vld [vmem:[#allocation2] sm:$0xff]
          %574 = vst.msk [vmem:[#allocation10] sm:$0xff] %vm332, %v573
          %v575 = vld [vmem:[#allocation4] sm:$0xff]
          %v576 = vmul.f32 %v575, 0.125
          %578 = vrot.lane.b32.xlu0 %v576, 64
          %v579 = vpop.permute.xlu0 %578
          %vm581 = vcmask 1048064
          %582 = vst.msk [vmem:[#allocation10] sm:$0xff] %vm581, %v579
          %v583 = vld [vmem:[#allocation5] sm:$0xff]
          %584 = vst.msk [vmem:[#allocation10 + $0x8] sm:$0xff] %vm332, %v583
        $region48: #{lm_forward.5} parent=39 // pred_fallthru
          _
        %s585 = sand.u32 %s146, 1
        %s586 = scalar_lea.sflag [#allocation7], %s585
        %s587 = sand.u32 %s146, 1
        %s588 = smul.addr %s587, 8
        %s589 = scalar_lea.vmem [#allocation6], %s588
        // Predicated region
        $region49: #{lm_forward.5} parent=39 // pred_check
          %p590 = pneg %p156
        $region50: #{lm_forward.5} parent=39 // pred_check_branch
          %592 = sbr.rel (%p590) target = $region52
        $region51: #{lm_forward.5} parent=39 // pred_region
          %s594 = ssub.s32 128, 128
          %595 = vsyncadd %s586, %s594
          %s596 = smul.addr %s23, 128
          %s597 = scalar_lea.hbm %s5, %s596
          %s599 = sshll.u32 %s589, 4
          %s600 = int_to_ptr.vmem [resolvable:$true] %s599
          %602 = dma.vmem_to_hbm [thread:$0]  %s600, 128, %s597, %s586
        $region52: #{lm_forward.5} parent=39 // pred_fallthru
          _
        // Predicated region
        $region53: #{lm_forward.5} parent=39 // pred_check
          %p603 = pneg %p177
        $region54: #{lm_forward.5} parent=39 // pred_check_branch
          %605 = sbr.rel (%p603) target = $region56
        $region55: #{lm_forward.5} parent=39 // pred_region
          %s607 = ssub.s32 128, 128
          %608 = vsyncadd [#allocation9], %s607
          %s610 = sshll.u32 [#allocation8], 4
          %s611 = int_to_ptr.vmem [resolvable:$true] %s610
          %613 = dma.vmem_to_hbm [thread:$0]  %s611, 128, %s6, [#allocation9]
        $region56: #{lm_forward.5} parent=39 // pred_fallthru
          _
        // Predicated region
        $region57: #{lm_forward.5} parent=39 // pred_check
          %p614 = pneg %p198
        $region58: #{lm_forward.5} parent=39 // pred_check_branch
          %616 = sbr.rel (%p614) target = $region60
        $region59: #{lm_forward.5} parent=39 // pred_region
          %s618 = ssub.s32 256, 256
          %619 = vsyncadd [#allocation9], %s618
          %s621 = sshll.u32 [#allocation10], 4
          %s622 = int_to_ptr.vmem [resolvable:$true] %s621
          %624 = dma.vmem_to_hbm [thread:$0]  %s622, 256, %s7, [#allocation9]
        $region60: #{lm_forward.5} parent=39 // pred_fallthru
          _
        // Predicated region
        $region61: #{lm_forward.5} parent=39 // pred_check
          %p625 = pneg %p177
        $region62: #{lm_forward.5} parent=39 // pred_check_branch
          %627 = sbr.rel (%p625) target = $region64
        $region63: #{lm_forward.5} parent=39 // pred_region
          %628 = dma.done [#allocation9], 128
        $region64: #{lm_forward.5} parent=39 // pred_fallthru
          _
        // Predicated region
        $region65: #{lm_forward.5} parent=39 // pred_check
          %p629 = pneg %p198
        $region66: #{lm_forward.5} parent=39 // pred_check_branch
          %631 = sbr.rel (%p629) target = $region68
        $region67: #{lm_forward.5} parent=39 // pred_region
          %632 = dma.done [#allocation9], 256
        $region68: #{lm_forward.5} parent=39 // pred_fallthru
          _
      $region40: #{lm_forward.5} parent=5 // pred_fallthru
        _
      %p633 = scmp.le.s32.totalorder 2, %s18
      // Predicated region
      $region69: #{lm_forward.5} parent=5 // pred_check
        %p634 = pneg %p633
      $region70: #{lm_forward.5} parent=5 // pred_check_branch
        %636 = sbr.rel (%p634) target = $region72
      $region71: #{lm_forward.5} parent=5 // pred_region
        %s637 = ssub.s32 %s18, 2
        // Predicated region
        $region73: #{lm_forward.5} parent=71 // pred_check
          %p638 = pneg %p162
        $region74: #{lm_forward.5} parent=71 // pred_check_branch
          %640 = sbr.rel (%p638) target = $region76
        $region75: #{lm_forward.5} parent=71 // pred_region
          %s641 = sand.u32 %s147, 1
          %s642 = scalar_lea.sflag [#allocation7], %s641
          %s643 = sand.u32 %s147, 1
          %s644 = smul.addr %s643, 8
          %s645 = scalar_lea.vmem [#allocation6], %s644
          %646 = dma.done %s642, 128
        $region76: #{lm_forward.5} parent=71 // pred_fallthru
          _
      $region72: #{lm_forward.5} parent=5 // pred_fallthru
        _
    $region6: #{lm_forward.5} parent=1 // loop_footer
      %s22 = sadd.s32 1, %s18
    $region7: #{lm_forward.5} parent=1 // loop_footer_branch
      %17 = sbr.rel target = $region3
    $region8: #{lm_forward.5} parent=1 // loop_exit
      _
    %647 = vsyncpa [#allocation7], 1
    %s648 = scalar_lea.sflag [#allocation7], 1
    %649 = vsyncpa %s648, 1
    %650 = vsyncpa [#allocation9], 1

</llo_original>
